<compile_context>
chip_gen: v5e
topology: v5e:2x2
jax: 0.10.0
libtpu: 0.0.40
codegen_flags: <defaults>
</compile_context>

<pallas_src>
import math

import jax
import jax.numpy as jnp
from jax import lax
from jax.experimental import pallas as pl
from jax.experimental.pallas import tpu as pltpu

_NEG_INF = -1e30  # large negative instead of -inf: keeps masked lanes on the cheap VALU path


def _compiler_params(dimension_semantics):
    # Raise scoped-VMEM limit (v5e default is 16 MiB; weight blocks are double-buffered).
    # 64 MiB is within physical VMEM on v5e/v6e/v7x.
    return pltpu.CompilerParams(
        dimension_semantics=dimension_semantics,
        vmem_limit_bytes=64 * 1024 * 1024,
    )


# --------------------------------------------------------------------------------------
# Linear kernel:  out = x @ W_t + b   (W_t already transposed in the wrapper)
# --------------------------------------------------------------------------------------
def _linear_kernel(x_ref, w_ref, b_ref, o_ref):
    # x_ref: (1, TQ, Cin)   w_ref: (Cin, Cout)   b_ref: (1, Cout) f32   o_ref: (1, TQ, Cout)
    acc = jnp.dot(x_ref[0], w_ref[...], preferred_element_type=jnp.float32)
    o_ref[0] = (acc + b_ref[0]).astype(o_ref.dtype)


def _linear(x, w_t, b, *, out_dtype, tq):
    """x: (B, T, Cin) in compute dtype, w_t: (Cin, Cout) in compute dtype, b: (Cout,)."""
    B, T, Cin = x.shape
    Cout = w_t.shape[1]
    assert T % tq == 0
    return pl.pallas_call(
        _linear_kernel,
        out_shape=jax.ShapeDtypeStruct((B, T, Cout), out_dtype),
        grid_spec=pltpu.PrefetchScalarGridSpec(
            num_scalar_prefetch=0,
            grid=(B, T // tq),
            in_specs=[
                pl.BlockSpec((1, tq, Cin), lambda b_, q_: (b_, q_, 0)),
                pl.BlockSpec((Cin, Cout), lambda b_, q_: (0, 0)),   # resident weight
                pl.BlockSpec((1, Cout), lambda b_, q_: (0, 0)),
            ],
            out_specs=pl.BlockSpec((1, tq, Cout), lambda b_, q_: (b_, q_, 0)),
        ),
        compiler_params=_compiler_params(("parallel", "parallel")),
    )(x, w_t, b.reshape(1, Cout).astype(jnp.float32))


# --------------------------------------------------------------------------------------
# Flash-style causal attention kernel over (B, Q-tiles, KV-tiles), heads batched.
# --------------------------------------------------------------------------------------
def _make_flash_kernel(tq, tk, scale):
    def kernel(q_ref, k_ref, v_ref, o_ref, m_sc, l_sc, acc_sc):
        qi = pl.program_id(1)
        ki = pl.program_id(2)

        @pl.when(ki == 0)
        def _():
            m_sc[...] = jnp.full_like(m_sc, _NEG_INF)
            l_sc[...] = jnp.zeros_like(l_sc)
            acc_sc[...] = jnp.zeros_like(acc_sc)

        # Skip KV tiles lying entirely in the causal future of this Q tile.
        @pl.when(ki * tk <= qi * tq + (tq - 1))
        def _():
            q = q_ref[0]                       # (H, TQ, D)  bf16
            k = k_ref[0]                       # (H, TK, D)
            v = v_ref[0]                       # (H, TK, D)
            # One batched-over-heads MXU matmul, contracting on D (no k.T transpose).
            s = jnp.einsum('hqd,hkd->hqk', q, k,
                           preferred_element_type=jnp.float32) * scale   # (H, TQ, TK) f32
            # Causal mask for this (qi, ki) tile, built once per grid step.
            q_pos = qi * tq + lax.broadcasted_iota(jnp.int32, (tq, tk), 0)
            k_pos = ki * tk + lax.broadcasted_iota(jnp.int32, (tq, tk), 1)
            s = jnp.where(q_pos >= k_pos, s, _NEG_INF)

            m_prev = m_sc[...]                                           # (H, TQ, 1)
            m_new = jnp.maximum(m_prev, s.max(axis=-1, keepdims=True))
            alpha = jnp.exp(m_prev - m_new)
            p = jnp.exp(s - m_new)                                       # unnormalized probs
            l_sc[...] = alpha * l_sc[...] + p.sum(axis=-1, keepdims=True)
            pv = jnp.einsum('hqk,hkd->hqd', p.astype(v.dtype), v,
                            preferred_element_type=jnp.float32)          # (H, TQ, D) f32
            acc_sc[...] = alpha * acc_sc[...] + pv
            m_sc[...] = m_new

        @pl.when(ki == pl.num_programs(2) - 1)
        def _():
            # Fold 1/l into the final scale; approx reciprocal uses the EUP slot.
            inv_l = pl.reciprocal(l_sc[...], approx=True)
            o_ref[0] = (acc_sc[...] * inv_l).astype(o_ref.dtype)

    return kernel


def _flash_attention(q, k, v, *, tq, tk):
    """q, k, v: (B, H, T, D) in compute dtype. Returns (B, H, T, D)."""
    B, H, T, D = q.shape
    assert T % tq == 0 and T % tk == 0
    scale = 1.0 / math.sqrt(D)
    kernel = _make_flash_kernel(tq, tk, scale)
    return pl.pallas_call(
        kernel,
        out_shape=jax.ShapeDtypeStruct((B, H, T, D), q.dtype),
        grid_spec=pltpu.PrefetchScalarGridSpec(
            num_scalar_prefetch=0,
            grid=(B, T // tq, T // tk),
            in_specs=[
                pl.BlockSpec((1, H, tq, D), lambda b, qi, ki: (b, 0, qi, 0)),
                pl.BlockSpec((1, H, tk, D), lambda b, qi, ki: (b, 0, ki, 0)),
                pl.BlockSpec((1, H, tk, D), lambda b, qi, ki: (b, 0, ki, 0)),
            ],
            out_specs=pl.BlockSpec((1, H, tq, D), lambda b, qi, ki: (b, 0, qi, 0)),
            scratch_shapes=[
                pltpu.VMEM((H, tq, 1), jnp.float32),   # running max m
                pltpu.VMEM((H, tq, 1), jnp.float32),   # running denom l
                pltpu.VMEM((H, tq, D), jnp.float32),   # output accumulator
            ],
        ),
        compiler_params=_compiler_params(("parallel", "parallel", "arbitrary")),
    )(q, k, v)


# --------------------------------------------------------------------------------------
# Full CausalSelfAttention forward (matches the PyTorch module with dropout = 0).
# --------------------------------------------------------------------------------------
def causal_self_attention(x, w_attn, b_attn, w_proj, b_proj, n_head,
                          *, compute_dtype=jnp.bfloat16, tq=128, tk=128):
    """x: (B, T, C) f32.  w_attn: (3C, C), w_proj: (C, C)  (PyTorch Linear convention)."""
    B, T, C = x.shape
    assert C % n_head == 0
    D = C // n_head
    tq = min(tq, T)
    tk = min(tk, T)

    # Pre-transpose weights in the wrapper so kernels contract without any in-kernel .T;
    # cast inputs/weights to bf16 for the MXU fast path (f32 accumulation in-kernel).
    wa_t = jnp.asarray(w_attn).T.astype(compute_dtype)   # (C, 3C)
    wp_t = jnp.asarray(w_proj).T.astype(compute_dtype)   # (C, C)
    xc = x.astype(compute_dtype)

    # QKV projection (Pallas), then head split (cheap XLA layout plumbing).
    qkv = _linear(xc, wa_t, b_attn, out_dtype=compute_dtype, tq=tq)        # (B, T, 3C)
    q, k, v = jnp.split(qkv, 3, axis=-1)

    def split_heads(t):
        return t.reshape(B, T, n_head, D).transpose(0, 2, 1, 3)            # (B, H, T, D)

    q, k, v = split_heads(q), split_heads(k), split_heads(v)

    # Flash-style causal attention (Pallas).
    y = _flash_attention(q, k, v, tq=tq, tk=tk)                            # (B, H, T, D)

    # Merge heads: channel c = h*D + d  (matches y.transpose(1,2).view(B,T,C)).
    y = y.transpose(0, 2, 1, 3).reshape(B, T, C)

    # Output projection (Pallas). Dropout is identity (p = 0).
    return _linear(y, wp_t, b_proj, out_dtype=x.dtype, tq=tq)              # (B, T, C)


# --------------------------------------------------------------------------------------
# Plain-JAX reference mirroring the PyTorch forward (dropout = 0).
# --------------------------------------------------------------------------------------
def reference_attention(x, w_attn, b_attn, w_proj, b_proj, n_head):
    B, T, C = x.shape
    D = C // n_head
    qkv = jnp.einsum('btc,oc->bto', x, w_attn) + b_attn
    q, k, v = jnp.split(qkv, 3, axis=-1)
    q = q.reshape(B, T, n_head, D).transpose(0, 2, 1, 3)
    k = k.reshape(B, T, n_head, D).transpose(0, 2, 1, 3)
    v = v.reshape(B, T, n_head, D).transpose(0, 2, 1, 3)
    att = jnp.einsum('bhqd,bhkd->bhqk', q, k) / math.sqrt(D)
    mask = jnp.tril(jnp.ones((T, T), dtype=bool))
    att = jnp.where(mask[None, None], att, -jnp.inf)
    att = jax.nn.softmax(att, axis=-1)
    y = jnp.einsum('bhqk,bhkd->bhqd', att, v)
    y = y.transpose(0, 2, 1, 3).reshape(B, T, C)
    return jnp.einsum('btc,oc->bto', y, w_proj) + b_proj


if __name__ == "__main__":
    # Small config consistent with the module (n_embd % n_head == 0); T/C chosen so the
    # flash kernel actually exercises multiple Q and KV tiles (2x2) with head_dim = 64.
    B, T, C, n_head = 2, 256, 256, 4

    key = jax.random.PRNGKey(0)
    kx, kwa, kba, kwp, kbp = jax.random.split(key, 5)

    bound = 1.0 / math.sqrt(C)
    x      = jax.random.normal(kx, (B, T, C), dtype=jnp.float32)
    w_attn = jax.random.uniform(kwa, (3 * C, C), jnp.float32, -bound, bound)
    b_attn = jax.random.uniform(kba, (3 * C,), jnp.float32, -bound, bound)
    w_proj = jax.random.uniform(kwp, (C, C), jnp.float32, -bound, bound)
    b_proj = jax.random.uniform(kbp, (C,), jnp.float32, -bound, bound)

    out = causal_self_attention(x, w_attn, b_attn, w_proj, b_proj, n_head)
    out = jax.block_until_ready(out)

    ref = reference_attention(x, w_attn, b_attn, w_proj, b_proj, n_head)
    assert out.shape == (B, T, C)
    # bf16 MXU inputs -> loosened tolerance vs the f32 reference (per review note).
    assert jnp.allclose(out, ref, rtol=2e-2, atol=2e-2), "Pallas kernel mismatch vs reference"
    assert not bool(jnp.any(jnp.isnan(out))), "NaN in Pallas kernel output"

    print("KERNEL_OK")
</pallas_src>

<mosaic_0001>
module attributes {stable_mosaic.version = 11 : i64} {
  func.func @_linear_kernel(%arg0: i32, %arg1: i32, %arg2: memref<1x128x256xbf16, #tpu.memory_space<vmem>>, %arg3: memref<256x768xbf16, #tpu.memory_space<vmem>>, %arg4: memref<1x768xf32, #tpu.memory_space<vmem>>, %arg5: memref<1x128x768xbf16, #tpu.memory_space<vmem>>) attributes {dimension_semantics = [#tpu.dimension_semantics<parallel>, #tpu.dimension_semantics<parallel>], iteration_bounds = array<i64: 2, 2>, scalar_prefetch = 0 : i64, scratch_operands = 0 : i64, tpu.core_type = #tpu.core_type<tc>, window_params = [{transform_indices = @transform_0, window_bounds = array<i64: 1, 128, 256>}, {pipeline_mode = #tpu.pipeline_mode<synchronous>, transform_indices = @transform_1, window_bounds = array<i64: 256, 768>}, {pipeline_mode = #tpu.pipeline_mode<synchronous>, transform_indices = @transform_2, window_bounds = array<i64: 1, 768>}, {transform_indices = @transform_3, window_bounds = array<i64: 1, 128, 768>}]} {
    %c0 = arith.constant 0 : index
    %c0_0 = arith.constant 0 : index
    %c0_1 = arith.constant 0 : index
    %0 = vector.load %arg2[%c0, %c0_0, %c0_1] : memref<1x128x256xbf16, #tpu.memory_space<vmem>>, vector<1x128x256xbf16>
    %1 = vector.shape_cast %0 : vector<1x128x256xbf16> to vector<128x256xbf16>
    %c0_2 = arith.constant 0 : index
    %c0_3 = arith.constant 0 : index
    %2 = vector.load %arg3[%c0_2, %c0_3] : memref<256x768xbf16, #tpu.memory_space<vmem>>, vector<256x768xbf16>
    %cst = arith.constant dense<0.000000e+00> : vector<128x768xf32>
    %3 = tpu.matmul %1, %2, %cst {dimension_numbers = #tpu.dot_dimension_numbers<[1], [0], [0], [1], [0, 0, 1, 1], [], []>} : vector<128x256xbf16>, vector<256x768xbf16>, vector<128x768xf32> -> vector<128x768xf32>
    %c0_4 = arith.constant 0 : index
    %c0_5 = arith.constant 0 : index
    %4 = vector.load %arg4[%c0_4, %c0_5] : memref<1x768xf32, #tpu.memory_space<vmem>>, vector<1x768xf32>
    %5 = vector.shape_cast %4 : vector<1x768xf32> to vector<768xf32>
    %6 = vector.shape_cast %5 : vector<768xf32> to vector<1x768xf32>
    %7 = vector.broadcast %6 : vector<1x768xf32> to vector<128x768xf32>
    %8 = arith.addf %3, %7 : vector<128x768xf32>
    %9 = arith.truncf %8 : vector<128x768xf32> to vector<128x768xbf16>
    %c0_6 = arith.constant 0 : index
    %c0_7 = arith.constant 0 : index
    %c0_8 = arith.constant 0 : index
    %10 = vector.load %arg5[%c0_6, %c0_7, %c0_8] : memref<1x128x768xbf16, #tpu.memory_space<vmem>>, vector<1x128x768xbf16>
    %11 = vector.shape_cast %10 : vector<1x128x768xbf16> to vector<128x768xbf16>
    %12 = vector.shape_cast %9 : vector<128x768xbf16> to vector<1x128x768xbf16>
    tpu.vector_store %arg5[%c0_6, %c0_7, %c0_8], %12 {strides = array<i32>} : memref<1x128x768xbf16, #tpu.memory_space<vmem>>, vector<1x128x768xbf16>,
    return
  }
  func.func @transform_0(%arg0: i32, %arg1: i32) -> (i32, i32, i32) {
    %c0_i32 = arith.constant 0 : i32
    %c0_i32_0 = arith.constant 0 : i32
    return %arg0, %arg1, %c0_i32 : i32, i32, i32
  }
  func.func @transform_1(%arg0: i32, %arg1: i32) -> (i32, i32) {
    %c0_i32 = arith.constant 0 : i32
    %c0_i32_0 = arith.constant 0 : i32
    %c0_i32_1 = arith.constant 0 : i32
    return %c0_i32, %c0_i32_0 : i32, i32
  }
  func.func @transform_2(%arg0: i32, %arg1: i32) -> (i32, i32) {
    %c0_i32 = arith.constant 0 : i32
    %c0_i32_0 = arith.constant 0 : i32
    %c0_i32_1 = arith.constant 0 : i32
    return %c0_i32, %c0_i32_0 : i32, i32
  }
  func.func @transform_3(%arg0: i32, %arg1: i32) -> (i32, i32, i32) {
    %c0_i32 = arith.constant 0 : i32
    %c0_i32_0 = arith.constant 0 : i32
    return %arg0, %arg1, %c0_i32 : i32, i32, i32
  }
}

</mosaic_0001>

<llo_original>
// kernel: tpu_custom_call.1
$region0: #{tpu_custom_call.1}
  #allocation0 [shape = 'u32[]', space=smem, size = 0x4, offset = 0x4, fixed_abs, tag = 'smem constant byte address 0x4 - core index']
  #allocation1 [shape = 'u32[72,128]{1,0:T(1,128)}', space=vmem, size = 0x9000, scoped, tag = 'internal scratch']
  %s0 = inlined_call_operand.hbm [shape: bf16[2,256,256], index: 0, kind: input, shape index: {}]
  %s1 = inlined_call_operand.hbm [shape: bf16[256,768], index: 1, kind: input, shape index: {}]
  %s2 = inlined_call_operand.hbm [shape: f32[1,768], index: 2, kind: input, shape index: {}]
  %s3 = inlined_call_operand.hbm [shape: bf16[2,256,768], index: 3, kind: output, shape index: {}]
  %s4 = sld [smem:[#allocation0]]
  $region57: #{tpu_custom_call.1} parent=0
    _
  %s6 = ssub.s32 1, %s4
  %s7 = scalar_select 0, %s6, %s4
  $region1: #{tpu_custom_call.1} parent=0
    #allocation2 [shape = 'u8[131072]{0}', space=vmem, size = 0x20000, scoped, tag = 'input window, operand 0']
    #allocation3 [shape = 's32[2]{0}', space=sflag, size = 0x8, scoped, tag = 'scoped memory for tpu_custom_call.1']
    #allocation4 [shape = 's32[2]{0}', space=sflag, size = 0x8, scoped, tag = 'scoped memory for tpu_custom_call.1']
    #allocation5 [shape = 'u8[393216]{0}', space=vmem, size = 0x60000, scoped, tag = 'input window, operand 1, single buffered']
    #allocation6 [shape = 's32[1]{0}', space=sflag, size = 0x4, scoped, tag = 'scoped memory for tpu_custom_call.1']
    #allocation7 [shape = 'u8[3072]{0}', space=vmem, size = 0xc00, scoped, tag = 'input window, operand 2, single buffered']
    #allocation8 [shape = 'u8[393216]{0}', space=vmem, size = 0x60000, scoped, tag = 'output window, operand 0']
    %8 = vsyncpa [#allocation3], 0
    %s9 = scalar_lea.sflag [#allocation3], 1
    %10 = vsyncpa %s9, 0
    %11 = vsyncpa [#allocation6], 0
    %12 = vsyncpa [#allocation4], 0
    %s13 = scalar_lea.sflag [#allocation4], 1
    %14 = vsyncpa %s13, 0
    loop: start=0, step=1, limit=6
    $region2: #{tpu_custom_call.1} parent=1 // loop_pre_header
      _
    $region3: #{tpu_custom_call.1} parent=1 // loop_header
      %s16 = sphi 0, %s20
      %p17 = scmp.ge.s32.totalorder %s16, 6
      %s23 = sphi 0, %s35
      %s24 = sphi 0, %s31
      %s25 = sphi 0, %s23
      %s26 = sphi 0, %s24
      %s27 = sphi 0, %s25
      %s28 = sphi 0, %s26
      %s40 = sphi 0, %s42
      %s43 = sphi 0, %s40
      %s44 = sphi 0, %s43
      %s60 = sphi 0, %s44
      %s64 = sphi 0, %s64
      %s66 = sphi 0, %s64
      %s67 = sphi 0, %s66
      %s81 = sphi 0, %s67
      %s85 = sphi 0, %s85
      %s87 = sphi 0, %s85
      %s88 = sphi 0, %s87
      %s102 = sphi 0, %s88
      %s110 = sphi 0, %s112
      %s113 = sphi 0, %s110
      %s114 = sphi 0, %s113
      %s130 = sphi 0, %s114
    $region4: #{tpu_custom_call.1} parent=1 // loop_header_branch
      %19 = sbr.rel (%p17) target = $region8
    $region5: #{tpu_custom_call.1} parent=1 // loop_body
      %s21 = ssub.s32 %s16, 1
      %s22 = ssub.s32 %s16, 2
      %s29 = sadd.s32 1, %s24
      %p30 = scmp.ge.s32.totalorder %s29, 2
      %s31 = scalar_select %p30, 0, %s29
      %s32 = sadd.s32 1, %s23
      %s33 = scalar_select %p30, %s32, %s23
      %p34 = scmp.ge.s32.totalorder %s33, 2
      %s35 = scalar_select %p34, 0, %s33
      %s36 = ssub.s32 %s23, %s35
      %s37 = ssub.s32 %s24, %s31
      %s38 = sor.u32 %s36, %s37
      %p39 = scmp.eq.s32.totalorder %s38, 0
      %s41 = sadd.s32 %s40, 1
      %s42 = scalar_select %p39, %s40, %s41
      %p45 = pneg %p39
      %p46 = scmp.eq.s32.totalorder %s16, 3
      %p47 = por %p45, %p46
      %p48 = scmp.ne.s32.totalorder %s40, %s43
      %p49 = scmp.eq.s32.totalorder %s16, 0
      %p50 = por %p48, %p49
      %p51 = scmp.ne.s32.totalorder %s40, %s43
      %p52 = scmp.eq.s32.totalorder %s21, 3
      %p53 = por %p51, %p52
      %p54 = scmp.ne.s32.totalorder %s43, %s44
      %p55 = scmp.eq.s32.totalorder %s21, 0
      %p56 = por %p54, %p55
      %p57 = scmp.ne.s32.totalorder %s43, %s44
      %p58 = scmp.eq.s32.totalorder %s22, 3
      %p59 = por %p57, %p58
      %p61 = scmp.ne.s32.totalorder %s44, %s60
      %p62 = scmp.eq.s32.totalorder %s22, 0
      %p63 = por %p61, %p62
      %s65 = sadd.s32 %s64, 1
      %p68 = scmp.eq.s32.totalorder %s16, 3
      %p69 = scmp.ne.s32.totalorder %s64, %s66
      %p70 = scmp.eq.s32.totalorder %s16, 0
      %p71 = por %p69, %p70
      %p72 = scmp.ne.s32.totalorder %s64, %s66
      %p73 = scmp.eq.s32.totalorder %s21, 3
      %p74 = por %p72, %p73
      %p75 = scmp.ne.s32.totalorder %s66, %s67
      %p76 = scmp.eq.s32.totalorder %s21, 0
      %p77 = por %p75, %p76
      %p78 = scmp.ne.s32.totalorder %s66, %s67
      %p79 = scmp.eq.s32.totalorder %s22, 3
      %p80 = por %p78, %p79
      %p82 = scmp.ne.s32.totalorder %s67, %s81
      %p83 = scmp.eq.s32.totalorder %s22, 0
      %p84 = por %p82, %p83
      %s86 = sadd.s32 %s85, 1
      %p89 = scmp.eq.s32.totalorder %s16, 3
      %p90 = scmp.ne.s32.totalorder %s85, %s87
      %p91 = scmp.eq.s32.totalorder %s16, 0
      %p92 = por %p90, %p91
      %p93 = scmp.ne.s32.totalorder %s85, %s87
      %p94 = scmp.eq.s32.totalorder %s21, 3
      %p95 = por %p93, %p94
      %p96 = scmp.ne.s32.totalorder %s87, %s88
      %p97 = scmp.eq.s32.totalorder %s21, 0
      %p98 = por %p96, %p97
      %p99 = scmp.ne.s32.totalorder %s87, %s88
      %p100 = scmp.eq.s32.totalorder %s22, 3
      %p101 = por %p99, %p100
      %p103 = scmp.ne.s32.totalorder %s88, %s102
      %p104 = scmp.eq.s32.totalorder %s22, 0
      %p105 = por %p103, %p104
      %s106 = ssub.s32 %s23, %s35
      %s107 = ssub.s32 %s24, %s31
      %s108 = sor.u32 %s106, %s107
      %p109 = scmp.eq.s32.totalorder %s108, 0
      %s111 = sadd.s32 %s110, 1
      %s112 = scalar_select %p109, %s110, %s111
      %p115 = pneg %p109
      %p116 = scmp.eq.s32.totalorder %s16, 3
      %p117 = por %p115, %p116
      %p118 = scmp.ne.s32.totalorder %s110, %s113
      %p119 = scmp.eq.s32.totalorder %s16, 0
      %p120 = por %p118, %p119
      %p121 = scmp.ne.s32.totalorder %s110, %s113
      %p122 = scmp.eq.s32.totalorder %s21, 3
      %p123 = por %p121, %p122
      %p124 = scmp.ne.s32.totalorder %s113, %s114
      %p125 = scmp.eq.s32.totalorder %s21, 0
      %p126 = por %p124, %p125
      %p127 = scmp.ne.s32.totalorder %s113, %s114
      %p128 = scmp.eq.s32.totalorder %s22, 3
      %p129 = por %p127, %p128
      %p131 = scmp.ne.s32.totalorder %s114, %s130
      %p132 = scmp.eq.s32.totalorder %s22, 0
      %p133 = por %p131, %p132
      %p134 = scmp.le.s32.totalorder 1, %s16
      %p135 = scmp.lt.s32.totalorder %s16, 5
      %p136 = pnand %p134, %p135
      %p137 = pneg %p136
      // Predicated region
      $region9: #{tpu_custom_call.1} parent=5 // pred_check
        _
      $region10: #{tpu_custom_call.1} parent=5 // pred_check_branch
        %139 = sbr.rel (%p136) target = $region12
      $region11: #{tpu_custom_call.1} parent=5 // pred_region
        %s140 = ssub.s32 %s16, 1
        // Predicated region
        $region13: #{tpu_custom_call.1} parent=11 // pred_check
          %p141 = pneg %p77
        $region14: #{tpu_custom_call.1} parent=11 // pred_check_branch
          %143 = sbr.rel (%p141) target = $region16
        $region15: #{tpu_custom_call.1} parent=11 // pred_region
          %145 = vsyncadd [#allocation6], 0
          %s146 = sshll.u32 %s1, 4
          %s147 = int_to_ptr.hbm [resolvable:$true] %s146
          %s148 = sshll.u32 [#allocation5], 4
          %s149 = int_to_ptr.vmem [resolvable:$true] %s148
          %154 = dma.hbm_to_vmem [thread:$0]  %s147, 12288, %s149, [#allocation6], 384, 384, 24
        $region16: #{tpu_custom_call.1} parent=11 // pred_fallthru
          _
        // Predicated region
        $region17: #{tpu_custom_call.1} parent=11 // pred_check
          %p155 = pneg %p98
        $region18: #{tpu_custom_call.1} parent=11 // pred_check_branch
          %157 = sbr.rel (%p155) target = $region20
        $region19: #{tpu_custom_call.1} parent=11 // pred_region
          %159 = vsyncadd [#allocation6], 0
          %s161 = sshll.u32 %s2, 4
          %s162 = int_to_ptr.hbm [resolvable:$true] %s161
          %s163 = sshll.u32 [#allocation7], 4
          %s164 = int_to_ptr.vmem [resolvable:$true] %s163
          %166 = dma.hbm_to_vmem [thread:$0]  %s162, 96, %s164, [#allocation6]
        $region20: #{tpu_custom_call.1} parent=11 // pred_fallthru
          _
      $region12: #{tpu_custom_call.1} parent=5 // pred_fallthru
        _
      %p167 = scmp.lt.s32.totalorder %s16, 4
      // Predicated region
      $region21: #{tpu_custom_call.1} parent=5 // pred_check
        %p168 = pneg %p167
      $region22: #{tpu_custom_call.1} parent=5 // pred_check_branch
        %170 = sbr.rel (%p168) target = $region24
      $region23: #{tpu_custom_call.1} parent=5 // pred_region
        // Predicated region
        $region25: #{tpu_custom_call.1} parent=23 // pred_check
          %p171 = pneg %p50
        $region26: #{tpu_custom_call.1} parent=23 // pred_check_branch
          %173 = sbr.rel (%p171) target = $region28
        $region27: #{tpu_custom_call.1} parent=23 // pred_region
          %s174 = sand.u32 %s40, 1
          %s175 = scalar_lea.sflag [#allocation3], %s174
          %s176 = sand.u32 %s40, 1
          %s177 = smul.addr %s176, 128
          %s178 = scalar_lea.vmem [#allocation2], %s177
          %s179 = smul.u32 16, %s24
          %181 = vsyncadd %s175, 0
          %s182 = smul.addr %s179, 2
          %s183 = smul.addr %s23, 64
          %s184 = sadd.s32 %s182, %s183
          %s185 = smul.addr %s184, 4
          %s186 = scalar_lea.hbm %s0, %s185
          %s187 = sshll.u32 %s186, 4
          %s188 = int_to_ptr.hbm [resolvable:$true] %s187
          %s189 = sshll.u32 %s178, 4
          %s190 = int_to_ptr.vmem [resolvable:$true] %s189
          %195 = dma.hbm_to_vmem [thread:$0]  %s188, 2048, %s190, %s175, 128, 128, 8
        $region28: #{tpu_custom_call.1} parent=23 // pred_fallthru
          _
      $region24: #{tpu_custom_call.1} parent=5 // pred_fallthru
        _
      %p196 = scmp.le.s32.totalorder 1, %s16
      %p197 = scmp.lt.s32.totalorder %s16, 5
      %p198 = pnand %p196, %p197
      %p199 = pneg %p198
      // Predicated region
      $region29: #{tpu_custom_call.1} parent=5 // pred_check
        _
      $region30: #{tpu_custom_call.1} parent=5 // pred_check_branch
        %201 = sbr.rel (%p198) target = $region32
      $region31: #{tpu_custom_call.1} parent=5 // pred_region
        %s202 = ssub.s32 %s16, 1
        %s203 = sand.u32 %s43, 1
        %s204 = scalar_lea.sflag [#allocation3], %s203
        %s205 = sand.u32 %s43, 1
        %s206 = smul.addr %s205, 128
        %s207 = scalar_lea.vmem [#allocation2], %s206
        // Predicated region
        $region33: #{tpu_custom_call.1} parent=31 // pred_check
          %p208 = pneg %p56
        $region34: #{tpu_custom_call.1} parent=31 // pred_check_branch
          %210 = sbr.rel (%p208) target = $region36
        $region35: #{tpu_custom_call.1} parent=31 // pred_region
          %212 = dma.done %s204, 2048
        $region36: #{tpu_custom_call.1} parent=31 // pred_fallthru
          _
        // Predicated region
        $region37: #{tpu_custom_call.1} parent=31 // pred_check
          %p213 = pneg %p77
        $region38: #{tpu_custom_call.1} parent=31 // pred_check_branch
          %215 = sbr.rel (%p213) target = $region40
        $region39: #{tpu_custom_call.1} parent=31 // pred_region
          %217 = dma.done [#allocation6], 12288
        $region40: #{tpu_custom_call.1} parent=31 // pred_fallthru
          _
        // Predicated region
        $region41: #{tpu_custom_call.1} parent=31 // pred_check
          %p218 = pneg %p98
        $region42: #{tpu_custom_call.1} parent=31 // pred_check_branch
          %220 = sbr.rel (%p218) target = $region44
        $region43: #{tpu_custom_call.1} parent=31 // pred_region
          %222 = dma.done [#allocation6], 96
        $region44: #{tpu_custom_call.1} parent=31 // pred_fallthru
          _
        %s223 = sand.u32 %s43, 1
        %s224 = scalar_lea.sflag [#allocation3], %s223
        %s225 = sand.u32 %s43, 1
        %s226 = smul.addr %s225, 128
        %s227 = scalar_lea.vmem [#allocation2], %s226
        %p228 = pneg %p56
        %p229 = pneg %p53
        %p230 = pneg %p77
        %p231 = pneg %p74
        %p232 = pneg %p98
        %p233 = pneg %p95
        %p234 = pneg %p126
        %p235 = pneg %p123
        %s236 = sand.u32 %s113, 1
        %s237 = scalar_lea.sflag [#allocation4], %s236
        %s238 = sand.u32 %s113, 1
        %s239 = smul.addr %s238, 384
        %s240 = scalar_lea.vmem [#allocation8], %s239
        %s241 = smul.u32 16, %s26
        %s242 = smul.u32 16, %s26
        %v243 = vld [vmem:[%s207] sm:$0xff]
        %v244 = vld [vmem:[%s207 + $0x8] sm:$0xff]
        %v245 = vld [vmem:[%s207 + $0x10] sm:$0xff]
        %v246 = vld [vmem:[%s207 + $0x18] sm:$0xff]
        %v247 = vld [vmem:[%s207 + $0x20] sm:$0xff]
        %v248 = vld [vmem:[%s207 + $0x28] sm:$0xff]
        %v249 = vld [vmem:[%s207 + $0x30] sm:$0xff]
        %v250 = vld [vmem:[%s207 + $0x38] sm:$0xff]
        %v251 = vld [vmem:[%s207 + $0x40] sm:$0xff]
        %v252 = vld [vmem:[%s207 + $0x48] sm:$0xff]
        %v253 = vld [vmem:[%s207 + $0x50] sm:$0xff]
        %v254 = vld [vmem:[%s207 + $0x58] sm:$0xff]
        %v255 = vld [vmem:[%s207 + $0x60] sm:$0xff]
        %v256 = vld [vmem:[%s207 + $0x68] sm:$0xff]
        %v257 = vld [vmem:[%s207 + $0x70] sm:$0xff]
        %v258 = vld [vmem:[%s207 + $0x78] sm:$0xff]
        %v259 = vld [vmem:[#allocation5] sm:$0xff]
        %v260 = vld [vmem:[#allocation5 + $0x8] sm:$0xff]
        %v261 = vld [vmem:[#allocation5 + $0x10] sm:$0xff]
        %v262 = vld [vmem:[#allocation5 + $0x18] sm:$0xff]
        %v263 = vld [vmem:[#allocation5 + $0x20] sm:$0xff]
        %v264 = vld [vmem:[#allocation5 + $0x28] sm:$0xff]
        %v265 = vld [vmem:[#allocation5 + $0x30] sm:$0xff]
        %v266 = vld [vmem:[#allocation5 + $0x38] sm:$0xff]
        %v267 = vld [vmem:[#allocation5 + $0x40] sm:$0xff]
        %v268 = vld [vmem:[#allocation5 + $0x48] sm:$0xff]
        %v269 = vld [vmem:[#allocation5 + $0x50] sm:$0xff]
        %v270 = vld [vmem:[#allocation5 + $0x58] sm:$0xff]
        %v271 = vld [vmem:[#allocation5 + $0x60] sm:$0xff]
        %v272 = vld [vmem:[#allocation5 + $0x68] sm:$0xff]
        %v273 = vld [vmem:[#allocation5 + $0x70] sm:$0xff]
        %v274 = vld [vmem:[#allocation5 + $0x78] sm:$0xff]
        %v275 = vld [vmem:[#allocation5 + $0x80] sm:$0xff]
        %v276 = vld [vmem:[#allocation5 + $0x88] sm:$0xff]
        %v277 = vld [vmem:[#allocation5 + $0x90] sm:$0xff]
        %v278 = vld [vmem:[#allocation5 + $0x98] sm:$0xff]
        %v279 = vld [vmem:[#allocation5 + $0xa0] sm:$0xff]
        %v280 = vld [vmem:[#allocation5 + $0xa8] sm:$0xff]
        %v281 = vld [vmem:[#allocation5 + $0xb0] sm:$0xff]
        %v282 = vld [vmem:[#allocation5 + $0xb8] sm:$0xff]
        %v283 = vld [vmem:[#allocation5 + $0xc0] sm:$0xff]
        %v284 = vld [vmem:[#allocation5 + $0xc8] sm:$0xff]
        %v285 = vld [vmem:[#allocation5 + $0xd0] sm:$0xff]
        %v286 = vld [vmem:[#allocation5 + $0xd8] sm:$0xff]
        %v287 = vld [vmem:[#allocation5 + $0xe0] sm:$0xff]
        %v288 = vld [vmem:[#allocation5 + $0xe8] sm:$0xff]
        %v289 = vld [vmem:[#allocation5 + $0xf0] sm:$0xff]
        %v290 = vld [vmem:[#allocation5 + $0xf8] sm:$0xff]
        %v291 = vld [vmem:[#allocation5 + $0x100] sm:$0xff]
        %v292 = vld [vmem:[#allocation5 + $0x108] sm:$0xff]
        %v293 = vld [vmem:[#allocation5 + $0x110] sm:$0xff]
        %v294 = vld [vmem:[#allocation5 + $0x118] sm:$0xff]
        %v295 = vld [vmem:[#allocation5 + $0x120] sm:$0xff]
        %v296 = vld [vmem:[#allocation5 + $0x128] sm:$0xff]
        %v297 = vld [vmem:[#allocation5 + $0x130] sm:$0xff]
        %v298 = vld [vmem:[#allocation5 + $0x138] sm:$0xff]
        %v299 = vld [vmem:[#allocation5 + $0x140] sm:$0xff]
        %v300 = vld [vmem:[#allocation5 + $0x148] sm:$0xff]
        %v301 = vld [vmem:[#allocation5 + $0x150] sm:$0xff]
        %v302 = vld [vmem:[#allocation5 + $0x158] sm:$0xff]
        %v303 = vld [vmem:[#allocation5 + $0x160] sm:$0xff]
        %v304 = vld [vmem:[#allocation5 + $0x168] sm:$0xff]
        %v305 = vld [vmem:[#allocation5 + $0x170] sm:$0xff]
        %v306 = vld [vmem:[#allocation5 + $0x178] sm:$0xff]
        %v307 = vld [vmem:[#allocation5 + $0x180] sm:$0xff]
        %v308 = vld [vmem:[#allocation5 + $0x188] sm:$0xff]
        %v309 = vld [vmem:[#allocation5 + $0x190] sm:$0xff]
        %v310 = vld [vmem:[#allocation5 + $0x198] sm:$0xff]
        %v311 = vld [vmem:[#allocation5 + $0x1a0] sm:$0xff]
        %v312 = vld [vmem:[#allocation5 + $0x1a8] sm:$0xff]
        %v313 = vld [vmem:[#allocation5 + $0x1b0] sm:$0xff]
        %v314 = vld [vmem:[#allocation5 + $0x1b8] sm:$0xff]
        %v315 = vld [vmem:[#allocation5 + $0x1c0] sm:$0xff]
        %v316 = vld [vmem:[#allocation5 + $0x1c8] sm:$0xff]
        %v317 = vld [vmem:[#allocation5 + $0x1d0] sm:$0xff]
        %v318 = vld [vmem:[#allocation5 + $0x1d8] sm:$0xff]
        %v319 = vld [vmem:[#allocation5 + $0x1e0] sm:$0xff]
        %v320 = vld [vmem:[#allocation5 + $0x1e8] sm:$0xff]
        %v321 = vld [vmem:[#allocation5 + $0x1f0] sm:$0xff]
        %v322 = vld [vmem:[#allocation5 + $0x1f8] sm:$0xff]
        %v323 = vld [vmem:[#allocation5 + $0x200] sm:$0xff]
        %v324 = vld [vmem:[#allocation5 + $0x208] sm:$0xff]
        %v325 = vld [vmem:[#allocation5 + $0x210] sm:$0xff]
        %v326 = vld [vmem:[#allocation5 + $0x218] sm:$0xff]
        %v327 = vld [vmem:[#allocation5 + $0x220] sm:$0xff]
        %v328 = vld [vmem:[#allocation5 + $0x228] sm:$0xff]
        %v329 = vld [vmem:[#allocation5 + $0x230] sm:$0xff]
        %v330 = vld [vmem:[#allocation5 + $0x238] sm:$0xff]
        %v331 = vld [vmem:[#allocation5 + $0x240] sm:$0xff]
        %v332 = vld [vmem:[#allocation5 + $0x248] sm:$0xff]
        %v333 = vld [vmem:[#allocation5 + $0x250] sm:$0xff]
        %v334 = vld [vmem:[#allocation5 + $0x258] sm:$0xff]
        %v335 = vld [vmem:[#allocation5 + $0x260] sm:$0xff]
        %v336 = vld [vmem:[#allocation5 + $0x268] sm:$0xff]
        %v337 = vld [vmem:[#allocation5 + $0x270] sm:$0xff]
        %v338 = vld [vmem:[#allocation5 + $0x278] sm:$0xff]
        %v339 = vld [vmem:[#allocation5 + $0x280] sm:$0xff]
        %v340 = vld [vmem:[#allocation5 + $0x288] sm:$0xff]
        %v341 = vld [vmem:[#allocation5 + $0x290] sm:$0xff]
        %v342 = vld [vmem:[#allocation5 + $0x298] sm:$0xff]
        %v343 = vld [vmem:[#allocation5 + $0x2a0] sm:$0xff]
        %v344 = vld [vmem:[#allocation5 + $0x2a8] sm:$0xff]
        %v345 = vld [vmem:[#allocation5 + $0x2b0] sm:$0xff]
        %v346 = vld [vmem:[#allocation5 + $0x2b8] sm:$0xff]
        %v347 = vld [vmem:[#allocation5 + $0x2c0] sm:$0xff]
        %v348 = vld [vmem:[#allocation5 + $0x2c8] sm:$0xff]
        %v349 = vld [vmem:[#allocation5 + $0x2d0] sm:$0xff]
        %v350 = vld [vmem:[#allocation5 + $0x2d8] sm:$0xff]
        %v351 = vld [vmem:[#allocation5 + $0x2e0] sm:$0xff]
        %v352 = vld [vmem:[#allocation5 + $0x2e8] sm:$0xff]
        %v353 = vld [vmem:[#allocation5 + $0x2f0] sm:$0xff]
        %v354 = vld [vmem:[#allocation5 + $0x2f8] sm:$0xff]
        %v355 = vld [vmem:[#allocation7] sm:$0x3f]
        %v357 = vperm.slane %v355, 0
        %v358 = vperm.slane %v355, 1
        %v359 = vperm.slane %v355, 2
        %v360 = vperm.slane %v355, 3
        %v361 = vperm.slane %v355, 4
        %v362 = vperm.slane %v355, 5
        %v385 = vunpack.c.l.b16 %v243
        %v386 = vunpack.c.h.b16 %v243
        %v387 = vunpack.c.l.b16 %v244
        %v388 = vunpack.c.h.b16 %v244
        %v389 = vunpack.c.l.b16 %v245
        %v390 = vunpack.c.h.b16 %v245
        %v391 = vunpack.c.l.b16 %v246
        %v392 = vunpack.c.h.b16 %v246
        %v393 = vunpack.c.l.b16 %v247
        %v394 = vunpack.c.h.b16 %v247
        %v395 = vunpack.c.l.b16 %v248
        %v396 = vunpack.c.h.b16 %v248
        %v397 = vunpack.c.l.b16 %v249
        %v398 = vunpack.c.h.b16 %v249
        %v399 = vunpack.c.l.b16 %v250
        %v400 = vunpack.c.h.b16 %v250
        %v401 = vunpack.c.l.b16 %v251
        %v402 = vunpack.c.h.b16 %v251
        %v403 = vunpack.c.l.b16 %v252
        %v404 = vunpack.c.h.b16 %v252
        %v405 = vunpack.c.l.b16 %v253
        %v406 = vunpack.c.h.b16 %v253
        %v407 = vunpack.c.l.b16 %v254
        %v408 = vunpack.c.h.b16 %v254
        %v409 = vunpack.c.l.b16 %v255
        %v410 = vunpack.c.h.b16 %v255
        %v411 = vunpack.c.l.b16 %v256
        %v412 = vunpack.c.h.b16 %v256
        %v413 = vunpack.c.l.b16 %v257
        %v414 = vunpack.c.h.b16 %v257
        %v415 = vunpack.c.l.b16 %v258
        %v416 = vunpack.c.h.b16 %v258
        %v417 = vpack.c.b16 %v387, %v385
        %v418 = vpack.c.b16 %v388, %v386
        %v419 = vpack.c.b16 %v391, %v389
        %v420 = vpack.c.b16 %v392, %v390
        %v421 = vpack.c.b16 %v395, %v393
        %v422 = vpack.c.b16 %v396, %v394
        %v423 = vpack.c.b16 %v399, %v397
        %v424 = vpack.c.b16 %v400, %v398
        %v425 = vpack.c.b16 %v403, %v401
        %v426 = vpack.c.b16 %v404, %v402
        %v427 = vpack.c.b16 %v407, %v405
        %v428 = vpack.c.b16 %v408, %v406
        %v429 = vpack.c.b16 %v411, %v409
        %v430 = vpack.c.b16 %v412, %v410
        %v431 = vpack.c.b16 %v415, %v413
        %v432 = vpack.c.b16 %v416, %v414
        %v545 = vunpack.c.l.b16 %v259
        %v546 = vunpack.c.h.b16 %v259
        %v547 = vunpack.c.l.b16 %v260
        %v548 = vunpack.c.h.b16 %v260
        %v549 = vunpack.c.l.b16 %v261
        %v550 = vunpack.c.h.b16 %v261
        %v551 = vunpack.c.l.b16 %v262
        %v552 = vunpack.c.h.b16 %v262
        %v553 = vunpack.c.l.b16 %v263
        %v554 = vunpack.c.h.b16 %v263
        %v555 = vunpack.c.l.b16 %v264
        %v556 = vunpack.c.h.b16 %v264
        %v557 = vunpack.c.l.b16 %v265
        %v558 = vunpack.c.h.b16 %v265
        %v559 = vunpack.c.l.b16 %v266
        %v560 = vunpack.c.h.b16 %v266
        %v561 = vunpack.c.l.b16 %v267
        %v562 = vunpack.c.h.b16 %v267
        %v563 = vunpack.c.l.b16 %v268
        %v564 = vunpack.c.h.b16 %v268
        %v565 = vunpack.c.l.b16 %v269
        %v566 = vunpack.c.h.b16 %v269
        %v567 = vunpack.c.l.b16 %v270
        %v568 = vunpack.c.h.b16 %v270
        %v569 = vunpack.c.l.b16 %v271
        %v570 = vunpack.c.h.b16 %v271
        %v571 = vunpack.c.l.b16 %v272
        %v572 = vunpack.c.h.b16 %v272
        %v573 = vunpack.c.l.b16 %v273
        %v574 = vunpack.c.h.b16 %v273
        %v575 = vunpack.c.l.b16 %v274
        %v576 = vunpack.c.h.b16 %v274
        %v577 = vunpack.c.l.b16 %v275
        %v578 = vunpack.c.h.b16 %v275
        %v579 = vunpack.c.l.b16 %v276
        %v580 = vunpack.c.h.b16 %v276
        %v581 = vunpack.c.l.b16 %v277
        %v582 = vunpack.c.h.b16 %v277
        %v583 = vunpack.c.l.b16 %v278
        %v584 = vunpack.c.h.b16 %v278
        %v585 = vunpack.c.l.b16 %v279
        %v586 = vunpack.c.h.b16 %v279
        %v587 = vunpack.c.l.b16 %v280
        %v588 = vunpack.c.h.b16 %v280
        %v589 = vunpack.c.l.b16 %v281
        %v590 = vunpack.c.h.b16 %v281
        %v591 = vunpack.c.l.b16 %v282
        %v592 = vunpack.c.h.b16 %v282
        %v593 = vunpack.c.l.b16 %v283
        %v594 = vunpack.c.h.b16 %v283
        %v595 = vunpack.c.l.b16 %v284
        %v596 = vunpack.c.h.b16 %v284
        %v597 = vunpack.c.l.b16 %v285
        %v598 = vunpack.c.h.b16 %v285
        %v599 = vunpack.c.l.b16 %v286
        %v600 = vunpack.c.h.b16 %v286
        %v601 = vunpack.c.l.b16 %v287
        %v602 = vunpack.c.h.b16 %v287
        %v603 = vunpack.c.l.b16 %v288
        %v604 = vunpack.c.h.b16 %v288
        %v605 = vunpack.c.l.b16 %v289
        %v606 = vunpack.c.h.b16 %v289
        %v607 = vunpack.c.l.b16 %v290
        %v608 = vunpack.c.h.b16 %v290
        %v609 = vunpack.c.l.b16 %v291
        %v610 = vunpack.c.h.b16 %v291
        %v611 = vunpack.c.l.b16 %v292
        %v612 = vunpack.c.h.b16 %v292
        %v613 = vunpack.c.l.b16 %v293
        %v614 = vunpack.c.h.b16 %v293
        %v615 = vunpack.c.l.b16 %v294
        %v616 = vunpack.c.h.b16 %v294
        %v617 = vunpack.c.l.b16 %v295
        %v618 = vunpack.c.h.b16 %v295
        %v619 = vunpack.c.l.b16 %v296
        %v620 = vunpack.c.h.b16 %v296
        %v621 = vunpack.c.l.b16 %v297
        %v622 = vunpack.c.h.b16 %v297
        %v623 = vunpack.c.l.b16 %v298
        %v624 = vunpack.c.h.b16 %v298
        %v625 = vunpack.c.l.b16 %v299
        %v626 = vunpack.c.h.b16 %v299
        %v627 = vunpack.c.l.b16 %v300
        %v628 = vunpack.c.h.b16 %v300
        %v629 = vunpack.c.l.b16 %v301
        %v630 = vunpack.c.h.b16 %v301
        %v631 = vunpack.c.l.b16 %v302
        %v632 = vunpack.c.h.b16 %v302
        %v633 = vunpack.c.l.b16 %v303
        %v634 = vunpack.c.h.b16 %v303
        %v635 = vunpack.c.l.b16 %v304
        %v636 = vunpack.c.h.b16 %v304
        %v637 = vunpack.c.l.b16 %v305
        %v638 = vunpack.c.h.b16 %v305
        %v639 = vunpack.c.l.b16 %v306
        %v640 = vunpack.c.h.b16 %v306
        %v641 = vunpack.c.l.b16 %v307
        %v642 = vunpack.c.h.b16 %v307
        %v643 = vunpack.c.l.b16 %v308
        %v644 = vunpack.c.h.b16 %v308
        %v645 = vunpack.c.l.b16 %v309
        %v646 = vunpack.c.h.b16 %v309
        %v647 = vunpack.c.l.b16 %v310
        %v648 = vunpack.c.h.b16 %v310
        %v649 = vunpack.c.l.b16 %v311
        %v650 = vunpack.c.h.b16 %v311
        %v651 = vunpack.c.l.b16 %v312
        %v652 = vunpack.c.h.b16 %v312
        %v653 = vunpack.c.l.b16 %v313
        %v654 = vunpack.c.h.b16 %v313
        %v655 = vunpack.c.l.b16 %v314
        %v656 = vunpack.c.h.b16 %v314
        %v657 = vunpack.c.l.b16 %v315
        %v658 = vunpack.c.h.b16 %v315
        %v659 = vunpack.c.l.b16 %v316
        %v660 = vunpack.c.h.b16 %v316
        %v661 = vunpack.c.l.b16 %v317
        %v662 = vunpack.c.h.b16 %v317
        %v663 = vunpack.c.l.b16 %v318
        %v664 = vunpack.c.h.b16 %v318
        %v665 = vunpack.c.l.b16 %v319
        %v666 = vunpack.c.h.b16 %v319
        %v667 = vunpack.c.l.b16 %v320
        %v668 = vunpack.c.h.b16 %v320
        %v669 = vunpack.c.l.b16 %v321
        %v670 = vunpack.c.h.b16 %v321
        %v671 = vunpack.c.l.b16 %v322
        %v672 = vunpack.c.h.b16 %v322
        %v673 = vunpack.c.l.b16 %v323
        %v674 = vunpack.c.h.b16 %v323
        %v675 = vunpack.c.l.b16 %v324
        %v676 = vunpack.c.h.b16 %v324
        %v677 = vunpack.c.l.b16 %v325
        %v678 = vunpack.c.h.b16 %v325
        %v679 = vunpack.c.l.b16 %v326
        %v680 = vunpack.c.h.b16 %v326
        %v681 = vunpack.c.l.b16 %v327
        %v682 = vunpack.c.h.b16 %v327
        %v683 = vunpack.c.l.b16 %v328
        %v684 = vunpack.c.h.b16 %v328
        %v685 = vunpack.c.l.b16 %v329
        %v686 = vunpack.c.h.b16 %v329
        %v687 = vunpack.c.l.b16 %v330
        %v688 = vunpack.c.h.b16 %v330
        %v689 = vunpack.c.l.b16 %v331
        %v690 = vunpack.c.h.b16 %v331
        %v691 = vunpack.c.l.b16 %v332
        %v692 = vunpack.c.h.b16 %v332
        %v693 = vunpack.c.l.b16 %v333
        %v694 = vunpack.c.h.b16 %v333
        %v695 = vunpack.c.l.b16 %v334
        %v696 = vunpack.c.h.b16 %v334
        %v697 = vunpack.c.l.b16 %v335
        %v698 = vunpack.c.h.b16 %v335
        %v699 = vunpack.c.l.b16 %v336
        %v700 = vunpack.c.h.b16 %v336
        %v701 = vunpack.c.l.b16 %v337
        %v702 = vunpack.c.h.b16 %v337
        %v703 = vunpack.c.l.b16 %v338
        %v704 = vunpack.c.h.b16 %v338
        %v705 = vunpack.c.l.b16 %v339
        %v706 = vunpack.c.h.b16 %v339
        %v707 = vunpack.c.l.b16 %v340
        %v708 = vunpack.c.h.b16 %v340
        %v709 = vunpack.c.l.b16 %v341
        %v710 = vunpack.c.h.b16 %v341
        %v711 = vunpack.c.l.b16 %v342
        %v712 = vunpack.c.h.b16 %v342
        %v713 = vunpack.c.l.b16 %v343
        %v714 = vunpack.c.h.b16 %v343
        %v715 = vunpack.c.l.b16 %v344
        %v716 = vunpack.c.h.b16 %v344
        %v717 = vunpack.c.l.b16 %v345
        %v718 = vunpack.c.h.b16 %v345
        %v719 = vunpack.c.l.b16 %v346
        %v720 = vunpack.c.h.b16 %v346
        %v721 = vunpack.c.l.b16 %v347
        %v722 = vunpack.c.h.b16 %v347
        %v723 = vunpack.c.l.b16 %v348
        %v724 = vunpack.c.h.b16 %v348
        %v725 = vunpack.c.l.b16 %v349
        %v726 = vunpack.c.h.b16 %v349
        %v727 = vunpack.c.l.b16 %v350
        %v728 = vunpack.c.h.b16 %v350
        %v729 = vunpack.c.l.b16 %v351
        %v730 = vunpack.c.h.b16 %v351
        %v731 = vunpack.c.l.b16 %v352
        %v732 = vunpack.c.h.b16 %v352
        %v733 = vunpack.c.l.b16 %v353
        %v734 = vunpack.c.h.b16 %v353
        %v735 = vunpack.c.l.b16 %v354
        %v736 = vunpack.c.h.b16 %v354
        %v737 = vpack.c.b16 %v551, %v545
        %v738 = vpack.c.b16 %v552, %v546
        %v739 = vpack.c.b16 %v553, %v547
        %v740 = vpack.c.b16 %v554, %v548
        %v741 = vpack.c.b16 %v555, %v549
        %v742 = vpack.c.b16 %v556, %v550
        %v743 = vpack.c.b16 %v563, %v557
        %v744 = vpack.c.b16 %v564, %v558
        %v745 = vpack.c.b16 %v565, %v559
        %v746 = vpack.c.b16 %v566, %v560
        %v747 = vpack.c.b16 %v567, %v561
        %v748 = vpack.c.b16 %v568, %v562
        %v749 = vpack.c.b16 %v575, %v569
        %v750 = vpack.c.b16 %v576, %v570
        %v751 = vpack.c.b16 %v577, %v571
        %v752 = vpack.c.b16 %v578, %v572
        %v753 = vpack.c.b16 %v579, %v573
        %v754 = vpack.c.b16 %v580, %v574
        %v755 = vpack.c.b16 %v587, %v581
        %v756 = vpack.c.b16 %v588, %v582
        %v757 = vpack.c.b16 %v589, %v583
        %v758 = vpack.c.b16 %v590, %v584
        %v759 = vpack.c.b16 %v591, %v585
        %v760 = vpack.c.b16 %v592, %v586
        %v761 = vpack.c.b16 %v599, %v593
        %v762 = vpack.c.b16 %v600, %v594
        %v763 = vpack.c.b16 %v601, %v595
        %v764 = vpack.c.b16 %v602, %v596
        %v765 = vpack.c.b16 %v603, %v597
        %v766 = vpack.c.b16 %v604, %v598
        %v767 = vpack.c.b16 %v611, %v605
        %v768 = vpack.c.b16 %v612, %v606
        %v769 = vpack.c.b16 %v613, %v607
        %v770 = vpack.c.b16 %v614, %v608
        %v771 = vpack.c.b16 %v615, %v609
        %v772 = vpack.c.b16 %v616, %v610
        %v773 = vpack.c.b16 %v623, %v617
        %v774 = vpack.c.b16 %v624, %v618
        %v775 = vpack.c.b16 %v625, %v619
        %v776 = vpack.c.b16 %v626, %v620
        %v777 = vpack.c.b16 %v627, %v621
        %v778 = vpack.c.b16 %v628, %v622
        %v779 = vpack.c.b16 %v635, %v629
        %v780 = vpack.c.b16 %v636, %v630
        %v781 = vpack.c.b16 %v637, %v631
        %v782 = vpack.c.b16 %v638, %v632
        %v783 = vpack.c.b16 %v639, %v633
        %v784 = vpack.c.b16 %v640, %v634
        %v785 = vpack.c.b16 %v647, %v641
        %v786 = vpack.c.b16 %v648, %v642
        %v787 = vpack.c.b16 %v649, %v643
        %v788 = vpack.c.b16 %v650, %v644
        %v789 = vpack.c.b16 %v651, %v645
        %v790 = vpack.c.b16 %v652, %v646
        %v791 = vpack.c.b16 %v659, %v653
        %v792 = vpack.c.b16 %v660, %v654
        %v793 = vpack.c.b16 %v661, %v655
        %v794 = vpack.c.b16 %v662, %v656
        %v795 = vpack.c.b16 %v663, %v657
        %v796 = vpack.c.b16 %v664, %v658
        %v797 = vpack.c.b16 %v671, %v665
        %v798 = vpack.c.b16 %v672, %v666
        %v799 = vpack.c.b16 %v673, %v667
        %v800 = vpack.c.b16 %v674, %v668
        %v801 = vpack.c.b16 %v675, %v669
        %v802 = vpack.c.b16 %v676, %v670
        %v803 = vpack.c.b16 %v683, %v677
        %v804 = vpack.c.b16 %v684, %v678
        %v805 = vpack.c.b16 %v685, %v679
        %v806 = vpack.c.b16 %v686, %v680
        %v807 = vpack.c.b16 %v687, %v681
        %v808 = vpack.c.b16 %v688, %v682
        %v809 = vpack.c.b16 %v695, %v689
        %v810 = vpack.c.b16 %v696, %v690
        %v811 = vpack.c.b16 %v697, %v691
        %v812 = vpack.c.b16 %v698, %v692
        %v813 = vpack.c.b16 %v699, %v693
        %v814 = vpack.c.b16 %v700, %v694
        %v815 = vpack.c.b16 %v707, %v701
        %v816 = vpack.c.b16 %v708, %v702
        %v817 = vpack.c.b16 %v709, %v703
        %v818 = vpack.c.b16 %v710, %v704
        %v819 = vpack.c.b16 %v711, %v705
        %v820 = vpack.c.b16 %v712, %v706
        %v821 = vpack.c.b16 %v719, %v713
        %v822 = vpack.c.b16 %v720, %v714
        %v823 = vpack.c.b16 %v721, %v715
        %v824 = vpack.c.b16 %v722, %v716
        %v825 = vpack.c.b16 %v723, %v717
        %v826 = vpack.c.b16 %v724, %v718
        %v827 = vpack.c.b16 %v731, %v725
        %v828 = vpack.c.b16 %v732, %v726
        %v829 = vpack.c.b16 %v733, %v727
        %v830 = vpack.c.b16 %v734, %v728
        %v831 = vpack.c.b16 %v735, %v729
        %v832 = vpack.c.b16 %v736, %v730
        %929 = vmatpush.bf16.msra.mxu0 %v779
        %930 = vmatpush.bf16.msra.mxu0 %v773
        %931 = vmatpush.bf16.msra.mxu0 %v767
        %932 = vmatpush.bf16.msra.mxu0 %v761
        %933 = vmatpush.bf16.msra.mxu0 %v755
        %934 = vmatpush.bf16.msra.mxu0 %v749
        %935 = vmatpush.bf16.msra.mxu0 %v743
        %936 = vmatpush.bf16.msra.mxu0 %v737
        %937 = vmatmul.bf16.gmra.mxu0 %v417
        %v938 = vpop.f32.mrf.mxu0
        %v939 = vadd.f32 %v357, %v938
        %v940 = vpop.f32.mrf.mxu0
        %v941 = vadd.f32 %v357, %v940
        %942 = vmatmul.bf16.gmra.mxu0 %v419
        %v943 = vpop.f32.mrf.mxu0
        %v944 = vadd.f32 %v357, %v943
        %v945 = vpop.f32.mrf.mxu0
        %v946 = vadd.f32 %v357, %v945
        %947 = vmatmul.bf16.gmra.mxu0 %v421
        %v948 = vpop.f32.mrf.mxu0
        %v949 = vadd.f32 %v357, %v948
        %v950 = vpop.f32.mrf.mxu0
        %v951 = vadd.f32 %v357, %v950
        %952 = vmatmul.bf16.gmra.mxu0 %v423
        %v953 = vpop.f32.mrf.mxu0
        %v954 = vadd.f32 %v357, %v953
        %v955 = vpop.f32.mrf.mxu0
        %v956 = vadd.f32 %v357, %v955
        %957 = vmatmul.bf16.gmra.mxu0 %v425
        %v958 = vpop.f32.mrf.mxu0
        %v959 = vadd.f32 %v357, %v958
        %v960 = vpop.f32.mrf.mxu0
        %v961 = vadd.f32 %v357, %v960
        %962 = vmatmul.bf16.gmra.mxu0 %v427
        %v963 = vpop.f32.mrf.mxu0
        %v964 = vadd.f32 %v357, %v963
        %v965 = vpop.f32.mrf.mxu0
        %v966 = vadd.f32 %v357, %v965
        %967 = vmatmul.bf16.gmra.mxu0 %v429
        %v968 = vpop.f32.mrf.mxu0
        %v969 = vadd.f32 %v357, %v968
        %v970 = vpop.f32.mrf.mxu0
        %v971 = vadd.f32 %v357, %v970
        %972 = vmatmul.bf16.gmra.mxu0 %v431
        %v973 = vpop.f32.mrf.mxu0
        %v974 = vadd.f32 %v357, %v973
        %v975 = vpop.f32.mrf.mxu0
        %v976 = vadd.f32 %v357, %v975
        %977 = vdwg.mxu0
        %978 = vmatpush.bf16.msra.mxu0 %v827
        %979 = vmatpush.bf16.msra.mxu0 %v821
        %980 = vmatpush.bf16.msra.mxu0 %v815
        %981 = vmatpush.bf16.msra.mxu0 %v809
        %982 = vmatpush.bf16.msra.mxu0 %v803
        %983 = vmatpush.bf16.msra.mxu0 %v797
        %984 = vmatpush.bf16.msra.mxu0 %v791
        %985 = vmatpush.bf16.msra.mxu0 %v785
        %986 = vmatmul.bf16.gmra.mxu0 %v418
        %v987 = vpop.f32.mrf.mxu0
        %v988 = vadd.f32 %v939, %v987
        %v989 = vpop.f32.mrf.mxu0
        %v990 = vadd.f32 %v941, %v989
        %991 = vmatmul.bf16.gmra.mxu0 %v420
        %v992 = vpop.f32.mrf.mxu0
        %v993 = vadd.f32 %v944, %v992
        %v994 = vpop.f32.mrf.mxu0
        %v995 = vadd.f32 %v946, %v994
        %996 = vmatmul.bf16.gmra.mxu0 %v422
        %v997 = vpop.f32.mrf.mxu0
        %v998 = vadd.f32 %v949, %v997
        %v999 = vpop.f32.mrf.mxu0
        %v1000 = vadd.f32 %v951, %v999
        %1001 = vmatmul.bf16.gmra.mxu0 %v424
        %v1002 = vpop.f32.mrf.mxu0
        %v1003 = vadd.f32 %v954, %v1002
        %v1004 = vpop.f32.mrf.mxu0
        %v1005 = vadd.f32 %v956, %v1004
        %1006 = vmatmul.bf16.gmra.mxu0 %v426
        %v1007 = vpop.f32.mrf.mxu0
        %v1008 = vadd.f32 %v959, %v1007
        %v1009 = vpop.f32.mrf.mxu0
        %v1010 = vadd.f32 %v961, %v1009
        %1011 = vmatmul.bf16.gmra.mxu0 %v428
        %v1012 = vpop.f32.mrf.mxu0
        %v1013 = vadd.f32 %v964, %v1012
        %v1014 = vpop.f32.mrf.mxu0
        %v1015 = vadd.f32 %v966, %v1014
        %1016 = vmatmul.bf16.gmra.mxu0 %v430
        %v1017 = vpop.f32.mrf.mxu0
        %v1018 = vadd.f32 %v969, %v1017
        %v1019 = vpop.f32.mrf.mxu0
        %v1020 = vadd.f32 %v971, %v1019
        %1021 = vmatmul.bf16.gmra.mxu0 %v432
        %v1022 = vpop.f32.mrf.mxu0
        %v1023 = vadd.f32 %v974, %v1022
        %v1024 = vpop.f32.mrf.mxu0
        %v1025 = vadd.f32 %v976, %v1024
        %1026 = vdwg.mxu0
        %1027 = vmatpush.bf16.msra.mxu0 %v780
        %1028 = vmatpush.bf16.msra.mxu0 %v774
        %1029 = vmatpush.bf16.msra.mxu0 %v768
        %1030 = vmatpush.bf16.msra.mxu0 %v762
        %1031 = vmatpush.bf16.msra.mxu0 %v756
        %1032 = vmatpush.bf16.msra.mxu0 %v750
        %1033 = vmatpush.bf16.msra.mxu0 %v744
        %1034 = vmatpush.bf16.msra.mxu0 %v738
        %1035 = vmatmul.bf16.gmra.mxu0 %v417
        %v1036 = vpop.f32.mrf.mxu0
        %v1037 = vadd.f32 %v358, %v1036
        %v1038 = vpop.f32.mrf.mxu0
        %v1039 = vadd.f32 %v358, %v1038
        %1040 = vmatmul.bf16.gmra.mxu0 %v419
        %v1041 = vpop.f32.mrf.mxu0
        %v1042 = vadd.f32 %v358, %v1041
        %v1043 = vpop.f32.mrf.mxu0
        %v1044 = vadd.f32 %v358, %v1043
        %1045 = vmatmul.bf16.gmra.mxu0 %v421
        %v1046 = vpop.f32.mrf.mxu0
        %v1047 = vadd.f32 %v358, %v1046
        %v1048 = vpop.f32.mrf.mxu0
        %v1049 = vadd.f32 %v358, %v1048
        %1050 = vmatmul.bf16.gmra.mxu0 %v423
        %v1051 = vpop.f32.mrf.mxu0
        %v1052 = vadd.f32 %v358, %v1051
        %v1053 = vpop.f32.mrf.mxu0
        %v1054 = vadd.f32 %v358, %v1053
        %1055 = vmatmul.bf16.gmra.mxu0 %v425
        %v1056 = vpop.f32.mrf.mxu0
        %v1057 = vadd.f32 %v358, %v1056
        %v1058 = vpop.f32.mrf.mxu0
        %v1059 = vadd.f32 %v358, %v1058
        %1060 = vmatmul.bf16.gmra.mxu0 %v427
        %v1061 = vpop.f32.mrf.mxu0
        %v1062 = vadd.f32 %v358, %v1061
        %v1063 = vpop.f32.mrf.mxu0
        %v1064 = vadd.f32 %v358, %v1063
        %1065 = vmatmul.bf16.gmra.mxu0 %v429
        %v1066 = vpop.f32.mrf.mxu0
        %v1067 = vadd.f32 %v358, %v1066
        %v1068 = vpop.f32.mrf.mxu0
        %v1069 = vadd.f32 %v358, %v1068
        %1070 = vmatmul.bf16.gmra.mxu0 %v431
        %v1071 = vpop.f32.mrf.mxu0
        %v1072 = vadd.f32 %v358, %v1071
        %v1073 = vpop.f32.mrf.mxu0
        %v1074 = vadd.f32 %v358, %v1073
        %1075 = vdwg.mxu0
        %1076 = vmatpush.bf16.msra.mxu0 %v828
        %1077 = vmatpush.bf16.msra.mxu0 %v822
        %1078 = vmatpush.bf16.msra.mxu0 %v816
        %1079 = vmatpush.bf16.msra.mxu0 %v810
        %1080 = vmatpush.bf16.msra.mxu0 %v804
        %1081 = vmatpush.bf16.msra.mxu0 %v798
        %1082 = vmatpush.bf16.msra.mxu0 %v792
        %1083 = vmatpush.bf16.msra.mxu0 %v786
        %1084 = vmatmul.bf16.gmra.mxu0 %v418
        %v1085 = vpop.f32.mrf.mxu0
        %v1086 = vadd.f32 %v1037, %v1085
        %v1087 = vpop.f32.mrf.mxu0
        %v1088 = vadd.f32 %v1039, %v1087
        %1089 = vmatmul.bf16.gmra.mxu0 %v420
        %v1090 = vpop.f32.mrf.mxu0
        %v1091 = vadd.f32 %v1042, %v1090
        %v1092 = vpop.f32.mrf.mxu0
        %v1093 = vadd.f32 %v1044, %v1092
        %1094 = vmatmul.bf16.gmra.mxu0 %v422
        %v1095 = vpop.f32.mrf.mxu0
        %v1096 = vadd.f32 %v1047, %v1095
        %v1097 = vpop.f32.mrf.mxu0
        %v1098 = vadd.f32 %v1049, %v1097
        %1099 = vmatmul.bf16.gmra.mxu0 %v424
        %v1100 = vpop.f32.mrf.mxu0
        %v1101 = vadd.f32 %v1052, %v1100
        %v1102 = vpop.f32.mrf.mxu0
        %v1103 = vadd.f32 %v1054, %v1102
        %1104 = vmatmul.bf16.gmra.mxu0 %v426
        %v1105 = vpop.f32.mrf.mxu0
        %v1106 = vadd.f32 %v1057, %v1105
        %v1107 = vpop.f32.mrf.mxu0
        %v1108 = vadd.f32 %v1059, %v1107
        %1109 = vmatmul.bf16.gmra.mxu0 %v428
        %v1110 = vpop.f32.mrf.mxu0
        %v1111 = vadd.f32 %v1062, %v1110
        %v1112 = vpop.f32.mrf.mxu0
        %v1113 = vadd.f32 %v1064, %v1112
        %1114 = vmatmul.bf16.gmra.mxu0 %v430
        %v1115 = vpop.f32.mrf.mxu0
        %v1116 = vadd.f32 %v1067, %v1115
        %v1117 = vpop.f32.mrf.mxu0
        %v1118 = vadd.f32 %v1069, %v1117
        %1119 = vmatmul.bf16.gmra.mxu0 %v432
        %v1120 = vpop.f32.mrf.mxu0
        %v1121 = vadd.f32 %v1072, %v1120
        %v1122 = vpop.f32.mrf.mxu0
        %v1123 = vadd.f32 %v1074, %v1122
        %1124 = vdwg.mxu0
        %1125 = vmatpush.bf16.msra.mxu0 %v781
        %1126 = vmatpush.bf16.msra.mxu0 %v775
        %1127 = vmatpush.bf16.msra.mxu0 %v769
        %1128 = vmatpush.bf16.msra.mxu0 %v763
        %1129 = vmatpush.bf16.msra.mxu0 %v757
        %1130 = vmatpush.bf16.msra.mxu0 %v751
        %1131 = vmatpush.bf16.msra.mxu0 %v745
        %1132 = vmatpush.bf16.msra.mxu0 %v739
        %1133 = vmatmul.bf16.gmra.mxu0 %v417
        %v1134 = vpop.f32.mrf.mxu0
        %v1135 = vadd.f32 %v359, %v1134
        %v1136 = vpop.f32.mrf.mxu0
        %v1137 = vadd.f32 %v359, %v1136
        %1138 = vmatmul.bf16.gmra.mxu0 %v419
        %v1139 = vpop.f32.mrf.mxu0
        %v1140 = vadd.f32 %v359, %v1139
        %v1141 = vpop.f32.mrf.mxu0
        %v1142 = vadd.f32 %v359, %v1141
        %1143 = vmatmul.bf16.gmra.mxu0 %v421
        %v1144 = vpop.f32.mrf.mxu0
        %v1145 = vadd.f32 %v359, %v1144
        %v1146 = vpop.f32.mrf.mxu0
        %v1147 = vadd.f32 %v359, %v1146
        %1148 = vmatmul.bf16.gmra.mxu0 %v423
        %v1149 = vpop.f32.mrf.mxu0
        %v1150 = vadd.f32 %v359, %v1149
        %v1151 = vpop.f32.mrf.mxu0
        %v1152 = vadd.f32 %v359, %v1151
        %1153 = vmatmul.bf16.gmra.mxu0 %v425
        %v1154 = vpop.f32.mrf.mxu0
        %v1155 = vadd.f32 %v359, %v1154
        %v1156 = vpop.f32.mrf.mxu0
        %v1157 = vadd.f32 %v359, %v1156
        %1158 = vmatmul.bf16.gmra.mxu0 %v427
        %v1159 = vpop.f32.mrf.mxu0
        %v1160 = vadd.f32 %v359, %v1159
        %v1161 = vpop.f32.mrf.mxu0
        %v1162 = vadd.f32 %v359, %v1161
        %1163 = vmatmul.bf16.gmra.mxu0 %v429
        %v1164 = vpop.f32.mrf.mxu0
        %v1165 = vadd.f32 %v359, %v1164
        %v1166 = vpop.f32.mrf.mxu0
        %v1167 = vadd.f32 %v359, %v1166
        %1168 = vmatmul.bf16.gmra.mxu0 %v431
        %v1169 = vpop.f32.mrf.mxu0
        %v1170 = vadd.f32 %v359, %v1169
        %v1171 = vpop.f32.mrf.mxu0
        %v1172 = vadd.f32 %v359, %v1171
        %1173 = vdwg.mxu0
        %1174 = vmatpush.bf16.msra.mxu0 %v829
        %1175 = vmatpush.bf16.msra.mxu0 %v823
        %1176 = vmatpush.bf16.msra.mxu0 %v817
        %1177 = vmatpush.bf16.msra.mxu0 %v811
        %1178 = vmatpush.bf16.msra.mxu0 %v805
        %1179 = vmatpush.bf16.msra.mxu0 %v799
        %1180 = vmatpush.bf16.msra.mxu0 %v793
        %1181 = vmatpush.bf16.msra.mxu0 %v787
        %1182 = vmatmul.bf16.gmra.mxu0 %v418
        %v1183 = vpop.f32.mrf.mxu0
        %v1184 = vadd.f32 %v1135, %v1183
        %v1185 = vpop.f32.mrf.mxu0
        %v1186 = vadd.f32 %v1137, %v1185
        %1187 = vmatmul.bf16.gmra.mxu0 %v420
        %v1188 = vpop.f32.mrf.mxu0
        %v1189 = vadd.f32 %v1140, %v1188
        %v1190 = vpop.f32.mrf.mxu0
        %v1191 = vadd.f32 %v1142, %v1190
        %1192 = vmatmul.bf16.gmra.mxu0 %v422
        %v1193 = vpop.f32.mrf.mxu0
        %v1194 = vadd.f32 %v1145, %v1193
        %v1195 = vpop.f32.mrf.mxu0
        %v1196 = vadd.f32 %v1147, %v1195
        %1197 = vmatmul.bf16.gmra.mxu0 %v424
        %v1198 = vpop.f32.mrf.mxu0
        %v1199 = vadd.f32 %v1150, %v1198
        %v1200 = vpop.f32.mrf.mxu0
        %v1201 = vadd.f32 %v1152, %v1200
        %1202 = vmatmul.bf16.gmra.mxu0 %v426
        %v1203 = vpop.f32.mrf.mxu0
        %v1204 = vadd.f32 %v1155, %v1203
        %v1205 = vpop.f32.mrf.mxu0
        %v1206 = vadd.f32 %v1157, %v1205
        %1207 = vmatmul.bf16.gmra.mxu0 %v428
        %v1208 = vpop.f32.mrf.mxu0
        %v1209 = vadd.f32 %v1160, %v1208
        %v1210 = vpop.f32.mrf.mxu0
        %v1211 = vadd.f32 %v1162, %v1210
        %1212 = vmatmul.bf16.gmra.mxu0 %v430
        %v1213 = vpop.f32.mrf.mxu0
        %v1214 = vadd.f32 %v1165, %v1213
        %v1215 = vpop.f32.mrf.mxu0
        %v1216 = vadd.f32 %v1167, %v1215
        %1217 = vmatmul.bf16.gmra.mxu0 %v432
        %v1218 = vpop.f32.mrf.mxu0
        %v1219 = vadd.f32 %v1170, %v1218
        %v1220 = vpop.f32.mrf.mxu0
        %v1221 = vadd.f32 %v1172, %v1220
        %1222 = vdwg.mxu0
        %1223 = vmatpush.bf16.msra.mxu0 %v782
        %1224 = vmatpush.bf16.msra.mxu0 %v776
        %1225 = vmatpush.bf16.msra.mxu0 %v770
        %1226 = vmatpush.bf16.msra.mxu0 %v764
        %1227 = vmatpush.bf16.msra.mxu0 %v758
        %1228 = vmatpush.bf16.msra.mxu0 %v752
        %1229 = vmatpush.bf16.msra.mxu0 %v746
        %1230 = vmatpush.bf16.msra.mxu0 %v740
        %1231 = vmatmul.bf16.gmra.mxu0 %v417
        %v1232 = vpop.f32.mrf.mxu0
        %v1233 = vadd.f32 %v360, %v1232
        %v1234 = vpop.f32.mrf.mxu0
        %v1235 = vadd.f32 %v360, %v1234
        %1236 = vmatmul.bf16.gmra.mxu0 %v419
        %v1237 = vpop.f32.mrf.mxu0
        %v1238 = vadd.f32 %v360, %v1237
        %v1239 = vpop.f32.mrf.mxu0
        %v1240 = vadd.f32 %v360, %v1239
        %1241 = vmatmul.bf16.gmra.mxu0 %v421
        %v1242 = vpop.f32.mrf.mxu0
        %v1243 = vadd.f32 %v360, %v1242
        %v1244 = vpop.f32.mrf.mxu0
        %v1245 = vadd.f32 %v360, %v1244
        %1246 = vmatmul.bf16.gmra.mxu0 %v423
        %v1247 = vpop.f32.mrf.mxu0
        %v1248 = vadd.f32 %v360, %v1247
        %v1249 = vpop.f32.mrf.mxu0
        %v1250 = vadd.f32 %v360, %v1249
        %1251 = vmatmul.bf16.gmra.mxu0 %v425
        %v1252 = vpop.f32.mrf.mxu0
        %v1253 = vadd.f32 %v360, %v1252
        %v1254 = vpop.f32.mrf.mxu0
        %v1255 = vadd.f32 %v360, %v1254
        %1256 = vmatmul.bf16.gmra.mxu0 %v427
        %v1257 = vpop.f32.mrf.mxu0
        %v1258 = vadd.f32 %v360, %v1257
        %v1259 = vpop.f32.mrf.mxu0
        %v1260 = vadd.f32 %v360, %v1259
        %1261 = vmatmul.bf16.gmra.mxu0 %v429
        %v1262 = vpop.f32.mrf.mxu0
        %v1263 = vadd.f32 %v360, %v1262
        %v1264 = vpop.f32.mrf.mxu0
        %v1265 = vadd.f32 %v360, %v1264
        %1266 = vmatmul.bf16.gmra.mxu0 %v431
        %v1267 = vpop.f32.mrf.mxu0
        %v1268 = vadd.f32 %v360, %v1267
        %v1269 = vpop.f32.mrf.mxu0
        %v1270 = vadd.f32 %v360, %v1269
        %1271 = vdwg.mxu0
        %1272 = vmatpush.bf16.msra.mxu0 %v830
        %1273 = vmatpush.bf16.msra.mxu0 %v824
        %1274 = vmatpush.bf16.msra.mxu0 %v818
        %1275 = vmatpush.bf16.msra.mxu0 %v812
        %1276 = vmatpush.bf16.msra.mxu0 %v806
        %1277 = vmatpush.bf16.msra.mxu0 %v800
        %1278 = vmatpush.bf16.msra.mxu0 %v794
        %1279 = vmatpush.bf16.msra.mxu0 %v788
        %1280 = vmatmul.bf16.gmra.mxu0 %v418
        %v1281 = vpop.f32.mrf.mxu0
        %v1282 = vadd.f32 %v1233, %v1281
        %v1283 = vpop.f32.mrf.mxu0
        %v1284 = vadd.f32 %v1235, %v1283
        %1285 = vmatmul.bf16.gmra.mxu0 %v420
        %v1286 = vpop.f32.mrf.mxu0
        %v1287 = vadd.f32 %v1238, %v1286
        %v1288 = vpop.f32.mrf.mxu0
        %v1289 = vadd.f32 %v1240, %v1288
        %1290 = vmatmul.bf16.gmra.mxu0 %v422
        %v1291 = vpop.f32.mrf.mxu0
        %v1292 = vadd.f32 %v1243, %v1291
        %v1293 = vpop.f32.mrf.mxu0
        %v1294 = vadd.f32 %v1245, %v1293
        %1295 = vmatmul.bf16.gmra.mxu0 %v424
        %v1296 = vpop.f32.mrf.mxu0
        %v1297 = vadd.f32 %v1248, %v1296
        %v1298 = vpop.f32.mrf.mxu0
        %v1299 = vadd.f32 %v1250, %v1298
        %1300 = vmatmul.bf16.gmra.mxu0 %v426
        %v1301 = vpop.f32.mrf.mxu0
        %v1302 = vadd.f32 %v1253, %v1301
        %v1303 = vpop.f32.mrf.mxu0
        %v1304 = vadd.f32 %v1255, %v1303
        %1305 = vmatmul.bf16.gmra.mxu0 %v428
        %v1306 = vpop.f32.mrf.mxu0
        %v1307 = vadd.f32 %v1258, %v1306
        %v1308 = vpop.f32.mrf.mxu0
        %v1309 = vadd.f32 %v1260, %v1308
        %1310 = vmatmul.bf16.gmra.mxu0 %v430
        %v1311 = vpop.f32.mrf.mxu0
        %v1312 = vadd.f32 %v1263, %v1311
        %v1313 = vpop.f32.mrf.mxu0
        %v1314 = vadd.f32 %v1265, %v1313
        %1315 = vmatmul.bf16.gmra.mxu0 %v432
        %v1316 = vpop.f32.mrf.mxu0
        %v1317 = vadd.f32 %v1268, %v1316
        %v1318 = vpop.f32.mrf.mxu0
        %v1319 = vadd.f32 %v1270, %v1318
        %1320 = vdwg.mxu0
        %1321 = vmatpush.bf16.msra.mxu0 %v783
        %1322 = vmatpush.bf16.msra.mxu0 %v777
        %1323 = vmatpush.bf16.msra.mxu0 %v771
        %1324 = vmatpush.bf16.msra.mxu0 %v765
        %1325 = vmatpush.bf16.msra.mxu0 %v759
        %1326 = vmatpush.bf16.msra.mxu0 %v753
        %1327 = vmatpush.bf16.msra.mxu0 %v747
        %1328 = vmatpush.bf16.msra.mxu0 %v741
        %1329 = vmatmul.bf16.gmra.mxu0 %v417
        %v1330 = vpop.f32.mrf.mxu0
        %v1331 = vadd.f32 %v361, %v1330
        %v1332 = vpop.f32.mrf.mxu0
        %v1333 = vadd.f32 %v361, %v1332
        %1334 = vmatmul.bf16.gmra.mxu0 %v419
        %v1335 = vpop.f32.mrf.mxu0
        %v1336 = vadd.f32 %v361, %v1335
        %v1337 = vpop.f32.mrf.mxu0
        %v1338 = vadd.f32 %v361, %v1337
        %1339 = vmatmul.bf16.gmra.mxu0 %v421
        %v1340 = vpop.f32.mrf.mxu0
        %v1341 = vadd.f32 %v361, %v1340
        %v1342 = vpop.f32.mrf.mxu0
        %v1343 = vadd.f32 %v361, %v1342
        %1344 = vmatmul.bf16.gmra.mxu0 %v423
        %v1345 = vpop.f32.mrf.mxu0
        %v1346 = vadd.f32 %v361, %v1345
        %v1347 = vpop.f32.mrf.mxu0
        %v1348 = vadd.f32 %v361, %v1347
        %1349 = vmatmul.bf16.gmra.mxu0 %v425
        %v1350 = vpop.f32.mrf.mxu0
        %v1351 = vadd.f32 %v361, %v1350
        %v1352 = vpop.f32.mrf.mxu0
        %v1353 = vadd.f32 %v361, %v1352
        %1354 = vmatmul.bf16.gmra.mxu0 %v427
        %v1355 = vpop.f32.mrf.mxu0
        %v1356 = vadd.f32 %v361, %v1355
        %v1357 = vpop.f32.mrf.mxu0
        %v1358 = vadd.f32 %v361, %v1357
        %1359 = vmatmul.bf16.gmra.mxu0 %v429
        %v1360 = vpop.f32.mrf.mxu0
        %v1361 = vadd.f32 %v361, %v1360
        %v1362 = vpop.f32.mrf.mxu0
        %v1363 = vadd.f32 %v361, %v1362
        %1364 = vmatmul.bf16.gmra.mxu0 %v431
        %v1365 = vpop.f32.mrf.mxu0
        %v1366 = vadd.f32 %v361, %v1365
        %v1367 = vpop.f32.mrf.mxu0
        %v1368 = vadd.f32 %v361, %v1367
        %1369 = vdwg.mxu0
        %1370 = vmatpush.bf16.msra.mxu0 %v831
        %1371 = vmatpush.bf16.msra.mxu0 %v825
        %1372 = vmatpush.bf16.msra.mxu0 %v819
        %1373 = vmatpush.bf16.msra.mxu0 %v813
        %1374 = vmatpush.bf16.msra.mxu0 %v807
        %1375 = vmatpush.bf16.msra.mxu0 %v801
        %1376 = vmatpush.bf16.msra.mxu0 %v795
        %1377 = vmatpush.bf16.msra.mxu0 %v789
        %1378 = vmatmul.bf16.gmra.mxu0 %v418
        %v1379 = vpop.f32.mrf.mxu0
        %v1380 = vadd.f32 %v1331, %v1379
        %v1381 = vpop.f32.mrf.mxu0
        %v1382 = vadd.f32 %v1333, %v1381
        %1383 = vmatmul.bf16.gmra.mxu0 %v420
        %v1384 = vpop.f32.mrf.mxu0
        %v1385 = vadd.f32 %v1336, %v1384
        %v1386 = vpop.f32.mrf.mxu0
        %v1387 = vadd.f32 %v1338, %v1386
        %1388 = vmatmul.bf16.gmra.mxu0 %v422
        %v1389 = vpop.f32.mrf.mxu0
        %v1390 = vadd.f32 %v1341, %v1389
        %v1391 = vpop.f32.mrf.mxu0
        %v1392 = vadd.f32 %v1343, %v1391
        %1393 = vmatmul.bf16.gmra.mxu0 %v424
        %v1394 = vpop.f32.mrf.mxu0
        %v1395 = vadd.f32 %v1346, %v1394
        %v1396 = vpop.f32.mrf.mxu0
        %v1397 = vadd.f32 %v1348, %v1396
        %1398 = vmatmul.bf16.gmra.mxu0 %v426
        %v1399 = vpop.f32.mrf.mxu0
        %v1400 = vadd.f32 %v1351, %v1399
        %v1401 = vpop.f32.mrf.mxu0
        %v1402 = vadd.f32 %v1353, %v1401
        %1403 = vmatmul.bf16.gmra.mxu0 %v428
        %v1404 = vpop.f32.mrf.mxu0
        %v1405 = vadd.f32 %v1356, %v1404
        %v1406 = vpop.f32.mrf.mxu0
        %v1407 = vadd.f32 %v1358, %v1406
        %1408 = vmatmul.bf16.gmra.mxu0 %v430
        %v1409 = vpop.f32.mrf.mxu0
        %v1410 = vadd.f32 %v1361, %v1409
        %v1411 = vpop.f32.mrf.mxu0
        %v1412 = vadd.f32 %v1363, %v1411
        %1413 = vmatmul.bf16.gmra.mxu0 %v432
        %v1414 = vpop.f32.mrf.mxu0
        %v1415 = vadd.f32 %v1366, %v1414
        %v1416 = vpop.f32.mrf.mxu0
        %v1417 = vadd.f32 %v1368, %v1416
        %1418 = vdwg.mxu0
        %1419 = vmatpush.bf16.msra.mxu0 %v784
        %1420 = vmatpush.bf16.msra.mxu0 %v778
        %1421 = vmatpush.bf16.msra.mxu0 %v772
        %1422 = vmatpush.bf16.msra.mxu0 %v766
        %1423 = vmatpush.bf16.msra.mxu0 %v760
        %1424 = vmatpush.bf16.msra.mxu0 %v754
        %1425 = vmatpush.bf16.msra.mxu0 %v748
        %1426 = vmatpush.bf16.msra.mxu0 %v742
        %1427 = vmatmul.bf16.gmra.mxu0 %v417
        %v1428 = vpop.f32.mrf.mxu0
        %v1429 = vadd.f32 %v362, %v1428
        %v1430 = vpop.f32.mrf.mxu0
        %v1431 = vadd.f32 %v362, %v1430
        %1432 = vmatmul.bf16.gmra.mxu0 %v419
        %v1433 = vpop.f32.mrf.mxu0
        %v1434 = vadd.f32 %v362, %v1433
        %v1435 = vpop.f32.mrf.mxu0
        %v1436 = vadd.f32 %v362, %v1435
        %1437 = vmatmul.bf16.gmra.mxu0 %v421
        %v1438 = vpop.f32.mrf.mxu0
        %v1439 = vadd.f32 %v362, %v1438
        %v1440 = vpop.f32.mrf.mxu0
        %v1441 = vadd.f32 %v362, %v1440
        %1442 = vmatmul.bf16.gmra.mxu0 %v423
        %v1443 = vpop.f32.mrf.mxu0
        %v1444 = vadd.f32 %v362, %v1443
        %v1445 = vpop.f32.mrf.mxu0
        %v1446 = vadd.f32 %v362, %v1445
        %1447 = vmatmul.bf16.gmra.mxu0 %v425
        %v1448 = vpop.f32.mrf.mxu0
        %v1449 = vadd.f32 %v362, %v1448
        %v1450 = vpop.f32.mrf.mxu0
        %v1451 = vadd.f32 %v362, %v1450
        %1452 = vmatmul.bf16.gmra.mxu0 %v427
        %v1453 = vpop.f32.mrf.mxu0
        %v1454 = vadd.f32 %v362, %v1453
        %v1455 = vpop.f32.mrf.mxu0
        %v1456 = vadd.f32 %v362, %v1455
        %1457 = vmatmul.bf16.gmra.mxu0 %v429
        %v1458 = vpop.f32.mrf.mxu0
        %v1459 = vadd.f32 %v362, %v1458
        %v1460 = vpop.f32.mrf.mxu0
        %v1461 = vadd.f32 %v362, %v1460
        %1462 = vmatmul.bf16.gmra.mxu0 %v431
        %v1463 = vpop.f32.mrf.mxu0
        %v1464 = vadd.f32 %v362, %v1463
        %v1465 = vpop.f32.mrf.mxu0
        %v1466 = vadd.f32 %v362, %v1465
        %1467 = vdwg.mxu0
        %1468 = vmatpush.bf16.msra.mxu0 %v832
        %1469 = vmatpush.bf16.msra.mxu0 %v826
        %1470 = vmatpush.bf16.msra.mxu0 %v820
        %1471 = vmatpush.bf16.msra.mxu0 %v814
        %1472 = vmatpush.bf16.msra.mxu0 %v808
        %1473 = vmatpush.bf16.msra.mxu0 %v802
        %1474 = vmatpush.bf16.msra.mxu0 %v796
        %1475 = vmatpush.bf16.msra.mxu0 %v790
        %1476 = vmatmul.bf16.gmra.mxu0 %v418
        %v1477 = vpop.f32.mrf.mxu0
        %v1478 = vadd.f32 %v1429, %v1477
        %v1479 = vpop.f32.mrf.mxu0
        %v1480 = vadd.f32 %v1431, %v1479
        %1481 = vmatmul.bf16.gmra.mxu0 %v420
        %v1482 = vpop.f32.mrf.mxu0
        %v1483 = vadd.f32 %v1434, %v1482
        %v1484 = vpop.f32.mrf.mxu0
        %v1485 = vadd.f32 %v1436, %v1484
        %1486 = vmatmul.bf16.gmra.mxu0 %v422
        %v1487 = vpop.f32.mrf.mxu0
        %v1488 = vadd.f32 %v1439, %v1487
        %v1489 = vpop.f32.mrf.mxu0
        %v1490 = vadd.f32 %v1441, %v1489
        %1491 = vmatmul.bf16.gmra.mxu0 %v424
        %v1492 = vpop.f32.mrf.mxu0
        %v1493 = vadd.f32 %v1444, %v1492
        %v1494 = vpop.f32.mrf.mxu0
        %v1495 = vadd.f32 %v1446, %v1494
        %1496 = vmatmul.bf16.gmra.mxu0 %v426
        %v1497 = vpop.f32.mrf.mxu0
        %v1498 = vadd.f32 %v1449, %v1497
        %v1499 = vpop.f32.mrf.mxu0
        %v1500 = vadd.f32 %v1451, %v1499
        %1501 = vmatmul.bf16.gmra.mxu0 %v428
        %v1502 = vpop.f32.mrf.mxu0
        %v1503 = vadd.f32 %v1454, %v1502
        %v1504 = vpop.f32.mrf.mxu0
        %v1505 = vadd.f32 %v1456, %v1504
        %1506 = vmatmul.bf16.gmra.mxu0 %v430
        %v1507 = vpop.f32.mrf.mxu0
        %v1508 = vadd.f32 %v1459, %v1507
        %v1509 = vpop.f32.mrf.mxu0
        %v1510 = vadd.f32 %v1461, %v1509
        %1511 = vmatmul.bf16.gmra.mxu0 %v432
        %v1512 = vpop.f32.mrf.mxu0
        %v1513 = vadd.f32 %v1464, %v1512
        %v1514 = vpop.f32.mrf.mxu0
        %v1515 = vadd.f32 %v1466, %v1514
        %1516 = vdwg.mxu0
        %v1517 = vpack.c.bf16 %v1086, %v988
        %v1518 = vpack.c.bf16 %v1282, %v1184
        %v1519 = vpack.c.bf16 %v1478, %v1380
        %v1520 = vpack.c.bf16 %v1088, %v990
        %v1521 = vpack.c.bf16 %v1284, %v1186
        %v1522 = vpack.c.bf16 %v1480, %v1382
        %v1523 = vpack.c.bf16 %v1091, %v993
        %v1524 = vpack.c.bf16 %v1287, %v1189
        %v1525 = vpack.c.bf16 %v1483, %v1385
        %v1526 = vpack.c.bf16 %v1093, %v995
        %v1527 = vpack.c.bf16 %v1289, %v1191
        %v1528 = vpack.c.bf16 %v1485, %v1387
        %v1529 = vpack.c.bf16 %v1096, %v998
        %v1530 = vpack.c.bf16 %v1292, %v1194
        %v1531 = vpack.c.bf16 %v1488, %v1390
        %v1532 = vpack.c.bf16 %v1098, %v1000
        %v1533 = vpack.c.bf16 %v1294, %v1196
        %v1534 = vpack.c.bf16 %v1490, %v1392
        %v1535 = vpack.c.bf16 %v1101, %v1003
        %v1536 = vpack.c.bf16 %v1297, %v1199
        %v1537 = vpack.c.bf16 %v1493, %v1395
        %v1538 = vpack.c.bf16 %v1103, %v1005
        %v1539 = vpack.c.bf16 %v1299, %v1201
        %v1540 = vpack.c.bf16 %v1495, %v1397
        %v1541 = vpack.c.bf16 %v1106, %v1008
        %v1542 = vpack.c.bf16 %v1302, %v1204
        %v1543 = vpack.c.bf16 %v1498, %v1400
        %v1544 = vpack.c.bf16 %v1108, %v1010
        %v1545 = vpack.c.bf16 %v1304, %v1206
        %v1546 = vpack.c.bf16 %v1500, %v1402
        %v1547 = vpack.c.bf16 %v1111, %v1013
        %v1548 = vpack.c.bf16 %v1307, %v1209
        %v1549 = vpack.c.bf16 %v1503, %v1405
        %v1550 = vpack.c.bf16 %v1113, %v1015
        %v1551 = vpack.c.bf16 %v1309, %v1211
        %v1552 = vpack.c.bf16 %v1505, %v1407
        %v1553 = vpack.c.bf16 %v1116, %v1018
        %v1554 = vpack.c.bf16 %v1312, %v1214
        %v1555 = vpack.c.bf16 %v1508, %v1410
        %v1556 = vpack.c.bf16 %v1118, %v1020
        %v1557 = vpack.c.bf16 %v1314, %v1216
        %v1558 = vpack.c.bf16 %v1510, %v1412
        %v1559 = vpack.c.bf16 %v1121, %v1023
        %v1560 = vpack.c.bf16 %v1317, %v1219
        %v1561 = vpack.c.bf16 %v1513, %v1415
        %v1562 = vpack.c.bf16 %v1123, %v1025
        %v1563 = vpack.c.bf16 %v1319, %v1221
        %v1564 = vpack.c.bf16 %v1515, %v1417
        %1565 = vst [vmem:[%s240] sm:$0xff] %v1517
        %1566 = vst [vmem:[%s240 + $0x8] sm:$0xff] %v1518
        %1567 = vst [vmem:[%s240 + $0x10] sm:$0xff] %v1519
        %1568 = vst [vmem:[%s240 + $0x18] sm:$0xff] %v1520
        %1569 = vst [vmem:[%s240 + $0x20] sm:$0xff] %v1521
        %1570 = vst [vmem:[%s240 + $0x28] sm:$0xff] %v1522
        %1571 = vst [vmem:[%s240 + $0x30] sm:$0xff] %v1523
        %1572 = vst [vmem:[%s240 + $0x38] sm:$0xff] %v1524
        %1573 = vst [vmem:[%s240 + $0x40] sm:$0xff] %v1525
        %1574 = vst [vmem:[%s240 + $0x48] sm:$0xff] %v1526
        %1575 = vst [vmem:[%s240 + $0x50] sm:$0xff] %v1527
        %1576 = vst [vmem:[%s240 + $0x58] sm:$0xff] %v1528
        %1577 = vst [vmem:[%s240 + $0x60] sm:$0xff] %v1529
        %1578 = vst [vmem:[%s240 + $0x68] sm:$0xff] %v1530
        %1579 = vst [vmem:[%s240 + $0x70] sm:$0xff] %v1531
        %1580 = vst [vmem:[%s240 + $0x78] sm:$0xff] %v1532
        %1581 = vst [vmem:[%s240 + $0x80] sm:$0xff] %v1533
        %1582 = vst [vmem:[%s240 + $0x88] sm:$0xff] %v1534
        %1583 = vst [vmem:[%s240 + $0x90] sm:$0xff] %v1535
        %1584 = vst [vmem:[%s240 + $0x98] sm:$0xff] %v1536
        %1585 = vst [vmem:[%s240 + $0xa0] sm:$0xff] %v1537
        %1586 = vst [vmem:[%s240 + $0xa8] sm:$0xff] %v1538
        %1587 = vst [vmem:[%s240 + $0xb0] sm:$0xff] %v1539
        %1588 = vst [vmem:[%s240 + $0xb8] sm:$0xff] %v1540
        %1589 = vst [vmem:[%s240 + $0xc0] sm:$0xff] %v1541
        %1590 = vst [vmem:[%s240 + $0xc8] sm:$0xff] %v1542
        %1591 = vst [vmem:[%s240 + $0xd0] sm:$0xff] %v1543
        %1592 = vst [vmem:[%s240 + $0xd8] sm:$0xff] %v1544
        %1593 = vst [vmem:[%s240 + $0xe0] sm:$0xff] %v1545
        %1594 = vst [vmem:[%s240 + $0xe8] sm:$0xff] %v1546
        %1595 = vst [vmem:[%s240 + $0xf0] sm:$0xff] %v1547
        %1596 = vst [vmem:[%s240 + $0xf8] sm:$0xff] %v1548
        %1597 = vst [vmem:[%s240 + $0x100] sm:$0xff] %v1549
        %1598 = vst [vmem:[%s240 + $0x108] sm:$0xff] %v1550
        %1599 = vst [vmem:[%s240 + $0x110] sm:$0xff] %v1551
        %1600 = vst [vmem:[%s240 + $0x118] sm:$0xff] %v1552
        %1601 = vst [vmem:[%s240 + $0x120] sm:$0xff] %v1553
        %1602 = vst [vmem:[%s240 + $0x128] sm:$0xff] %v1554
        %1603 = vst [vmem:[%s240 + $0x130] sm:$0xff] %v1555
        %1604 = vst [vmem:[%s240 + $0x138] sm:$0xff] %v1556
        %1605 = vst [vmem:[%s240 + $0x140] sm:$0xff] %v1557
        %1606 = vst [vmem:[%s240 + $0x148] sm:$0xff] %v1558
        %1607 = vst [vmem:[%s240 + $0x150] sm:$0xff] %v1559
        %1608 = vst [vmem:[%s240 + $0x158] sm:$0xff] %v1560
        %1609 = vst [vmem:[%s240 + $0x160] sm:$0xff] %v1561
        %1610 = vst [vmem:[%s240 + $0x168] sm:$0xff] %v1562
        %1611 = vst [vmem:[%s240 + $0x170] sm:$0xff] %v1563
        %1612 = vst [vmem:[%s240 + $0x178] sm:$0xff] %v1564
        %s1613 = sand.u32 %s113, 1
        %s1614 = scalar_lea.sflag [#allocation4], %s1613
        %s1615 = sand.u32 %s113, 1
        %s1616 = smul.addr %s1615, 384
        %s1617 = scalar_lea.vmem [#allocation8], %s1616
        // Predicated region
        $region45: #{tpu_custom_call.1} parent=31 // pred_check
          %p1618 = pneg %p123
        $region46: #{tpu_custom_call.1} parent=31 // pred_check_branch
          %1620 = sbr.rel (%p1618) target = $region48
        $region47: #{tpu_custom_call.1} parent=31 // pred_region
          %s1621 = smul.u32 16, %s26
          %1623 = vsyncadd %s1614, 0
          %s1624 = smul.addr %s1621, 6
          %s1625 = smul.addr %s25, 192
          %s1626 = sadd.s32 %s1624, %s1625
          %s1627 = smul.addr %s1626, 4
          %s1628 = scalar_lea.hbm %s3, %s1627
          %s1629 = sshll.u32 %s1617, 4
          %s1630 = int_to_ptr.vmem [resolvable:$true] %s1629
          %s1631 = sshll.u32 %s1628, 4
          %s1632 = int_to_ptr.hbm [resolvable:$true] %s1631
          %1637 = dma.vmem_to_hbm [thread:$0]  %s1630, 6144, %s1632, %s1614, 384, 384, 24
        $region48: #{tpu_custom_call.1} parent=31 // pred_fallthru
          _
      $region32: #{tpu_custom_call.1} parent=5 // pred_fallthru
        _
      %p1638 = scmp.le.s32.totalorder 2, %s16
      // Predicated region
      $region49: #{tpu_custom_call.1} parent=5 // pred_check
        %p1639 = pneg %p1638
      $region50: #{tpu_custom_call.1} parent=5 // pred_check_branch
        %1641 = sbr.rel (%p1639) target = $region52
      $region51: #{tpu_custom_call.1} parent=5 // pred_region
        %s1642 = ssub.s32 %s16, 2
        // Predicated region
        $region53: #{tpu_custom_call.1} parent=51 // pred_check
          %p1643 = pneg %p129
        $region54: #{tpu_custom_call.1} parent=51 // pred_check_branch
          %1645 = sbr.rel (%p1643) target = $region56
        $region55: #{tpu_custom_call.1} parent=51 // pred_region
          %s1646 = sand.u32 %s114, 1
          %s1647 = scalar_lea.sflag [#allocation4], %s1646
          %s1648 = sand.u32 %s114, 1
          %s1649 = smul.addr %s1648, 384
          %s1650 = scalar_lea.vmem [#allocation8], %s1649
          %1652 = dma.done %s1647, 6144
        $region56: #{tpu_custom_call.1} parent=51 // pred_fallthru
          _
      $region52: #{tpu_custom_call.1} parent=5 // pred_fallthru
        _
    $region6: #{tpu_custom_call.1} parent=1 // loop_footer
      %s20 = sadd.s32 1, %s16
    $region7: #{tpu_custom_call.1} parent=1 // loop_footer_branch
      %15 = sbr.rel target = $region3
    $region8: #{tpu_custom_call.1} parent=1 // loop_exit
      _
    %1653 = vsyncpa [#allocation3], 1
    %s1654 = scalar_lea.sflag [#allocation3], 1
    %1655 = vsyncpa %s1654, 1
    %1656 = vsyncpa [#allocation6], 1
    %1657 = vsyncpa [#allocation4], 1
    %s1658 = scalar_lea.sflag [#allocation4], 1
    %1659 = vsyncpa %s1658, 1

</llo_original>
